<compile_context>
chip_gen: v7x
topology: tpu7x:2x2x1
jax: 0.10.0
libtpu: 0.0.40
codegen_flags: <defaults>
</compile_context>

<pallas_src>
import functools
import math

import jax
import jax.numpy as jnp
from jax.experimental import pallas as pl
from jax.experimental.pallas import tpu as pltpu


def _round_up(x, m):
    return (x + m - 1) // m * m


def _vmem_limit(tile_bytes):
    """Scoped-VMEM budget derived from the actual (double-buffered) tile
    footprint, with headroom, clamped under v7x's 64 MiB physical VMEM."""
    return int(min(64 * 1024 * 1024,
                   max(8 * 1024 * 1024, 2 * tile_bytes + (2 << 20))))


# ----------------------------------------------------------------------------
# Pallas kernels: tiled bf16->f32 matmul, optional fused ReLU epilogue
# ----------------------------------------------------------------------------
def _matmul_kernel_single_k(x_ref, w_ref, o_ref, *, apply_relu):
    # K reduction fits a single block: no scratch, no pl.when, direct store.
    r = jnp.dot(x_ref[...], w_ref[...], preferred_element_type=jnp.float32)
    if apply_relu:
        r = jnp.maximum(r, 0.0)        # ReLU on the f32 result, before the cast
    o_ref[...] = r.astype(o_ref.dtype)


def _matmul_kernel_acc(x_ref, w_ref, o_ref, acc_ref, *, apply_relu):
    # General path (K split over the grid): f32 VMEM accumulator resident.
    @pl.when(pl.program_id(2) == 0)
    def _init():
        acc_ref[...] = jnp.zeros_like(acc_ref)

    acc_ref[...] += jnp.dot(x_ref[...], w_ref[...],
                            preferred_element_type=jnp.float32)

    @pl.when(pl.program_id(2) == pl.num_programs(2) - 1)
    def _finalize():
        r = acc_ref[...]
        if apply_relu:
            r = jnp.maximum(r, 0.0)
        o_ref[...] = r.astype(o_ref.dtype)


def fused_matmul_padded(x, w, *, apply_relu=False, out_dtype=jnp.float32,
                        tm=None, tn=None, tk=None):
    """maybe_relu(x @ w) on the MXU (bf16 inputs, f32 accumulate).

    Returns the PADDED (Mp, Np) result (lane-dense, Np a multiple of 128).
    Padded rows/cols are exactly zero (zero-padded x rows / w cols), so callers
    may either slice back to (M, N) or feed the padded block straight into a
    downstream kernel.
    """
    M, K = x.shape
    K2, N = w.shape
    assert K == K2

    # ---- M tiling: never pad beyond 16-row alignment; halve into >=2 blocks
    # (v7x megacore) while halvings stay 16-aligned and tiles stay modest.
    Mp16 = _round_up(M, 16)
    if tm is None:
        tm = Mp16
        while tm % 32 == 0 and (Mp16 // tm < 2 or tm > 256) and tm > 32:
            tm //= 2
    tm = max(16, min(_round_up(tm, 16), Mp16))
    Mp = _round_up(Mp16, tm)

    # ---- K: single reduction step whenever K fits one block (true for both
    # conv calls here) -> accumulator-free kernel.
    Kp128 = _round_up(K, 128)
    if tk is None:
        tk = Kp128 if Kp128 <= 1024 else 512
    tk = min(_round_up(tk, 128), Kp128)
    Kp = _round_up(Kp128, tk)

    # ---- N
    Np128 = _round_up(N, 128)
    if tn is None:
        tn = 256 if Np128 % 256 == 0 else 128
    tn = min(_round_up(tn, 128), Np128)
    Np = _round_up(Np128, tn)

    xb = x if x.dtype == jnp.bfloat16 else x.astype(jnp.bfloat16)
    wb = w if w.dtype == jnp.bfloat16 else w.astype(jnp.bfloat16)
    if (Mp, Kp) != (M, K):
        xb = jnp.pad(xb, ((0, Mp - M), (0, Kp - K)))
    if (Kp, Np) != (K, N):
        wb = jnp.pad(wb, ((0, Kp - K), (0, Np - N)))

    gm, gn, gk = Mp // tm, Np // tn, Kp // tk
    out_shape = jax.ShapeDtypeStruct((Mp, Np), out_dtype)
    o_bytes = jnp.dtype(out_dtype).itemsize

    if gk == 1:
        tile_bytes = 2 * (tm * Kp * 2) + 2 * (Kp * tn * 2) + 2 * (tm * tn * o_bytes)
        return pl.pallas_call(
            functools.partial(_matmul_kernel_single_k, apply_relu=apply_relu),
            grid_spec=pltpu.PrefetchScalarGridSpec(
                num_scalar_prefetch=0,
                grid=(gm, gn),
                in_specs=[pl.BlockSpec((tm, Kp), lambda i, j: (i, 0)),
                          pl.BlockSpec((Kp, tn), lambda i, j: (0, j))],
                out_specs=pl.BlockSpec((tm, tn), lambda i, j: (i, j))),
            out_shape=out_shape,
            compiler_params=pltpu.CompilerParams(
                dimension_semantics=("parallel", "parallel"),
                vmem_limit_bytes=_vmem_limit(tile_bytes)),
        )(xb, wb)

    tile_bytes = (2 * (tm * tk * 2) + 2 * (tk * tn * 2)
                  + 2 * (tm * tn * o_bytes) + tm * tn * 4)
    return pl.pallas_call(
        functools.partial(_matmul_kernel_acc, apply_relu=apply_relu),
        grid_spec=pltpu.PrefetchScalarGridSpec(
            num_scalar_prefetch=0,
            grid=(gm, gn, gk),
            in_specs=[pl.BlockSpec((tm, tk), lambda i, j, k: (i, k)),
                      pl.BlockSpec((tk, tn), lambda i, j, k: (k, j))],
            out_specs=pl.BlockSpec((tm, tn), lambda i, j, k: (i, j)),
            scratch_shapes=[pltpu.VMEM((tm, tn), jnp.float32)]),
        out_shape=out_shape,
        compiler_params=pltpu.CompilerParams(
            dimension_semantics=("parallel", "parallel", "arbitrary"),
            vmem_limit_bytes=_vmem_limit(tile_bytes)),
    )(xb, wb)


# ----------------------------------------------------------------------------
# Pallas kernel: fused tail  ReLU -> spatial mean -> lfc1 -> ReLU -> lfc2
# (one batch element per grid step; parallel over batch)
# ----------------------------------------------------------------------------
def _tail_kernel(x_ref, w1_ref, w2_ref, o_ref):
    h = jnp.maximum(x_ref[...], 0.0)               # (S, Cp) f32, fused activation
    m = jnp.mean(h, axis=0, keepdims=True)         # exact: S == true Ho*Wo
    m8 = jnp.broadcast_to(m, (8, m.shape[1]))      # sublane-aligned MXU operand
    h1 = jnp.dot(m8.astype(jnp.bfloat16), w1_ref[...],
                 preferred_element_type=jnp.float32)           # lfc1
    h1 = jnp.maximum(h1, 0.0)
    r = jnp.dot(h1.astype(jnp.bfloat16), w2_ref[...],
                preferred_element_type=jnp.float32)            # lfc2, (8, Np2)
    o_ref[...] = r[None]                            # (1, 8, Np2); rows identical


def fused_tail(x_pad, w1p, w2p, *, batch, spatial):
    """x_pad: (batch*spatial, Cp) f32 last-conv preactivations, channel-padded
    (padded columns are zero).  w1p: (Cp, 512) zero-row-padded; w2p: (512, Np2).
    Returns (batch, Np2) f32; columns [0:10]=real, [10:20]=imag, rest zero."""
    BS, Cp = x_pad.shape
    assert BS == batch * spatial, "tail fed a row-padded conv output"
    # TODO(synk): spatial not a multiple of 8 would need a row-padded tail path.
    assert spatial % 8 == 0, "spatial block must be sublane aligned"
    H1 = w1p.shape[1]
    Np2 = w2p.shape[1]
    w1b = w1p.astype(jnp.bfloat16)
    w2b = w2p.astype(jnp.bfloat16)
    tile_bytes = (2 * (spatial * Cp * 4) + 2 * (Cp * H1 * 2)
                  + 2 * (H1 * Np2 * 2) + 2 * (8 * Np2 * 4))
    out = pl.pallas_call(
        _tail_kernel,
        grid=(batch,),
        in_specs=[pl.BlockSpec((spatial, Cp), lambda b: (b, 0)),
                  pl.BlockSpec((Cp, H1), lambda b: (0, 0)),
                  pl.BlockSpec((H1, Np2), lambda b: (0, 0))],
        out_specs=pl.BlockSpec((1, 8, Np2), lambda b: (b, 0, 0)),
        out_shape=jax.ShapeDtypeStruct((batch, 8, Np2), jnp.float32),
        compiler_params=pltpu.CompilerParams(
            dimension_semantics=("parallel",),
            vmem_limit_bytes=_vmem_limit(tile_bytes)),
    )(x_pad, w1b, w2b)
    return out[:, 0, :]


# ----------------------------------------------------------------------------
# Plain-JAX glue (channel-last, bf16 patches, no NCHW<->NHWC in the hot path)
# ----------------------------------------------------------------------------
def im2col_nhwc(x, kh, kw):
    """Valid-conv patches on NHWC.  Rows (b, oh, ow); cols ordered (kh, kw, c)."""
    B, H, W, C = x.shape
    Ho, Wo = H - kh + 1, W - kw + 1
    cols = [x[:, i:i + Ho, j:j + Wo, :] for i in range(kh) for j in range(kw)]
    p = jnp.concatenate(cols, axis=-1)                  # (B, Ho, Wo, kh*kw*C)
    return p.reshape(B * Ho * Wo, kh * kw * C), (Ho, Wo)


def conv_w_to_mat(w):
    """(Cout, Cin, KH, KW) -> (KH*KW*Cin, Cout), matching im2col column order."""
    co, ci, kh, kw = w.shape
    return w.transpose(2, 3, 1, 0).reshape(kh * kw * ci, co)


def fold_key_conv(wa, wb, ka, kb):
    """Fold the per-input-channel complex key into the complex conv weights."""
    ka = ka[None, :, None, None]
    kb = kb[None, :, None, None]
    return ka * wa - kb * wb, ka * wb + kb * wa


def complex_conv_wmat(wa, wb, *, real_input):
    """Real-form weight matrix of a complex conv.

    real_input=True : input has Cin real channels           -> (25*Cin,   2*Cout)
    real_input=False: input has 2*Cin (real|imag) channels  -> (25*2*Cin, 2*Cout)
    Output columns: [0:Cout] real part, [Cout:2*Cout] imag part.
    """
    if real_input:
        w_real = jnp.concatenate([wa, wb], axis=0)          # (2Cout, Cin, 5, 5)
    else:
        top = jnp.concatenate([wa, wb], axis=0)             # from real input ch.
        bot = jnp.concatenate([-wb, wa], axis=0)            # from imag input ch.
        w_real = jnp.concatenate([top, bot], axis=1)        # (2Cout, 2Cin, 5, 5)
    return conv_w_to_mat(w_real)


def fold_key_linear(wa, wb, ka, kb):
    """wa,wb:(out,in); ka,kb:(in,). Returns key-folded (in,out) complex weights."""
    wa_t, wb_t = wa.T, wb.T
    ka = ka[:, None]
    kb = kb[:, None]
    return ka * wa_t - kb * wb_t, ka * wb_t + kb * wa_t


def complex_linear_wmat(wa_t, wb_t):
    """(in,out) complex -> real-form (2*in, 2*out); cols [0:out]=real, rest imag."""
    top = jnp.concatenate([wa_t, wb_t], axis=1)
    bot = jnp.concatenate([-wb_t, wa_t], axis=1)
    return jnp.concatenate([top, bot], axis=0)


# ----------------------------------------------------------------------------
# Parameter construction (deterministic, in-script)
# ----------------------------------------------------------------------------
def init_params(key, input_dim, n_units, n_layers, period):
    cin = input_dim[0]
    ks = iter(jax.random.split(key, 64))
    params = {}

    def w_init(shape, fan_in):
        b = 1.0 / math.sqrt(fan_in)
        return jax.random.uniform(next(ks), shape, jnp.float32, -b, b)

    def phase_keys(feat):
        ph = jax.random.uniform(next(ks), (period, feat), jnp.float32,
                                -math.pi, math.pi)
        return jnp.cos(ph), jnp.sin(ph)

    # input ComplexConv(cin -> n_units, 5x5)
    params["conv0_wa"] = w_init((n_units, cin, 5, 5), cin * 25)
    params["conv0_wb"] = w_init((n_units, cin, 5, 5), cin * 25)

    # hidden HashConvSpCh layers
    for l in range(n_layers - 1):
        params[f"hconv{l}_wa"] = w_init((n_units, n_units, 5, 5), n_units * 25)
        params[f"hconv{l}_wb"] = w_init((n_units, n_units, 5, 5), n_units * 25)
        oa, ob = phase_keys(n_units)
        params[f"hconv{l}_oa"] = oa
        params[f"hconv{l}_ob"] = ob

    # lfc1: HashLinear(n_units -> 256)
    params["lfc1_wa"] = w_init((256, n_units), n_units)
    params["lfc1_wb"] = w_init((256, n_units), n_units)
    oa, ob = phase_keys(n_units)
    params["lfc1_oa"], params["lfc1_ob"] = oa, ob

    # lfc2: HashLinear(256 -> 10)
    params["lfc2_wa"] = w_init((10, 256), 256)
    params["lfc2_wb"] = w_init((10, 256), 256)
    oa, ob = phase_keys(256)
    params["lfc2_oa"], params["lfc2_ob"] = oa, ob

    return params


# ----------------------------------------------------------------------------
# Forward pass (mirrors CifarHashConvNet_.forward)
# ----------------------------------------------------------------------------
def cifar_hash_convnet_forward(params, x_a, time, n_units, n_layers):
    B = x_a.shape[0]
    K5 = 5
    C2 = 2 * n_units
    n_hidden = n_layers - 1

    # Channel-last, bf16 straight away (halves the 25x im2col patch traffic).
    # Single boundary transpose; complex signal packed as (..., [real | imag]).
    x_nhwc = jnp.transpose(x_a, (0, 2, 3, 1)).astype(jnp.bfloat16)

    # ---- input ComplexConv (x_b == 0 -> real input, half-width matmul) + ReLU
    Xcols, (Ho, Wo) = im2col_nhwc(x_nhwc, K5, K5)
    w0 = complex_conv_wmat(params["conv0_wa"], params["conv0_wb"],
                           real_input=True)                   # (25*Cin, 2*n_units)
    is_last = (n_hidden == 0)
    out_p = fused_matmul_padded(
        Xcols, w0, apply_relu=True,                           # ReLU fused in-kernel
        out_dtype=jnp.float32 if is_last else jnp.bfloat16)   # bf16 if it only feeds patches
    M = B * Ho * Wo
    if is_last:
        assert out_p.shape[0] == M, "tail path requires unpadded M rows"
        tail_in, tail_S = out_p, Ho * Wo      # already ReLU'd (idempotent in tail)
    else:
        act = out_p[:M, :C2].reshape(B, Ho, Wo, C2)           # bf16, channel-last

    preactivations = []

    # ---- hidden HashConvSpCh layers (hash key folded into the weights) ----
    for l in range(n_hidden):
        Xcols, (Ho, Wo) = im2col_nhwc(act, K5, K5)
        wa_f, wb_f = fold_key_conv(params[f"hconv{l}_wa"], params[f"hconv{l}_wb"],
                                   params[f"hconv{l}_oa"][time],
                                   params[f"hconv{l}_ob"][time])
        wmat = complex_conv_wmat(wa_f, wb_f, real_input=False)
        out_p = fused_matmul_padded(Xcols, wmat, apply_relu=False,  # preactivation needed
                                    out_dtype=jnp.float32)
        M = B * Ho * Wo
        # Returned preactivation = real part, NCHW once at the API boundary only
        # (the PyTorch module returns NCHW preactivations).
        pre_real = out_p[:M, :n_units].reshape(B, Ho, Wo, n_units)
        preactivations.append(jnp.transpose(pre_real, (0, 3, 1, 2)))
        if l == n_hidden - 1:
            # Feed the lane-dense padded block straight into the tail; the tail
            # fuses the ReLU, so no slice/reshape HBM round trip here.
            assert out_p.shape[0] == M, "tail path requires unpadded M rows"
            tail_in, tail_S = out_p, Ho * Wo
        else:
            act = jnp.maximum(out_p[:M, :C2], 0.0).astype(jnp.bfloat16) \
                     .reshape(B, Ho, Wo, C2)

    # ---- fused tail: ReLU -> spatial mean -> lfc1 -> ReLU -> lfc2 ----
    Cp = tail_in.shape[1]                 # conv channel dim padded to 128 lanes
    wa1, wb1 = fold_key_linear(params["lfc1_wa"], params["lfc1_wb"],
                               params["lfc1_oa"][time], params["lfc1_ob"][time])
    w1 = complex_linear_wmat(wa1, wb1)                        # (2*n_units, 512)
    w1p = jnp.pad(w1, ((0, Cp - w1.shape[0]), (0, 0)))        # zero rows for padded lanes
    wa2, wb2 = fold_key_linear(params["lfc2_wa"], params["lfc2_wb"],
                               params["lfc2_oa"][time], params["lfc2_ob"][time])
    w2 = complex_linear_wmat(wa2, wb2)                        # (512, 20)
    n_out = params["lfc2_wa"].shape[0]
    Np2 = _round_up(2 * n_out, 128)
    w2p = jnp.pad(w2, ((0, 0), (0, Np2 - 2 * n_out)))

    out_tail = fused_tail(tail_in, w1p, w2p, batch=B, spatial=tail_S)  # (B, 128)
    r_a = out_tail[:, :n_out]
    r_b = out_tail[:, n_out:2 * n_out]

    return r_a, r_b, preactivations


# ----------------------------------------------------------------------------
if __name__ == "__main__":
    key = jax.random.PRNGKey(0)

    input_dim = (4, 16, 16)      # (C, H, W) — square input as required
    n_units = 8
    n_layers = 2                 # 1 input ComplexConv + 1 hidden HashConvSpCh
    period = 3
    time = 1                     # context / hash-key index
    batch = 2

    params = init_params(key, input_dim, n_units, n_layers, period)
    x = jax.random.normal(jax.random.fold_in(key, 123),
                          (batch,) + input_dim, dtype=jnp.float32)

    fwd = jax.jit(cifar_hash_convnet_forward, static_argnums=(2, 3, 4))
    r_a, r_b, preacts = fwd(params, x, time, n_units, n_layers)
    jax.block_until_ready((r_a, r_b, preacts))

    assert r_a.shape == (batch, 10) and r_b.shape == (batch, 10)
    assert len(preacts) == n_layers - 1
    assert preacts[0].shape == (batch, n_units, 8, 8)   # 16 -4 -4 = 8
    assert bool(jnp.all(jnp.isfinite(r_a))) and bool(jnp.all(jnp.isfinite(r_b)))
    print("KERNEL_OK")
</pallas_src>

<mosaic_0001>
module attributes {stable_mosaic.version = 11 : i64} {
  func.func @_matmul_kernel_single_k(%arg0: i32, %arg1: i32, %arg2: memref<144x128xbf16, #tpu.memory_space<vmem>>, %arg3: memref<128x128xbf16, #tpu.memory_space<vmem>>, %arg4: memref<144x128xbf16, #tpu.memory_space<vmem>>) attributes {dimension_semantics = [#tpu.dimension_semantics<parallel>, #tpu.dimension_semantics<parallel>], iteration_bounds = array<i64: 2, 1>, scalar_prefetch = 0 : i64, scratch_operands = 0 : i64, tpu.core_type = #tpu.core_type<tc>, window_params = [{transform_indices = @transform_0, window_bounds = array<i64: 144, 128>}, {transform_indices = @transform_1, window_bounds = array<i64: 128, 128>}, {transform_indices = @transform_2, window_bounds = array<i64: 144, 128>}]} {
    %c0 = arith.constant 0 : index
    %c0_0 = arith.constant 0 : index
    %0 = vector.load %arg2[%c0, %c0_0] : memref<144x128xbf16, #tpu.memory_space<vmem>>, vector<144x128xbf16>
    %c0_1 = arith.constant 0 : index
    %c0_2 = arith.constant 0 : index
    %1 = vector.load %arg3[%c0_1, %c0_2] : memref<128x128xbf16, #tpu.memory_space<vmem>>, vector<128x128xbf16>
    %cst = arith.constant dense<0.000000e+00> : vector<144x128xf32>
    %2 = tpu.matmul %0, %1, %cst {dimension_numbers = #tpu.dot_dimension_numbers<[1], [0], [0], [1], [0, 0, 1, 1], [], []>} : vector<144x128xbf16>, vector<128x128xbf16>, vector<144x128xf32> -> vector<144x128xf32>
    %cst_3 = arith.constant 0.000000e+00 : f32
    %3 = vector.broadcast %cst_3 : f32 to vector<144x128xf32>
    %4 = arith.maximumf %2, %3 : vector<144x128xf32>
    %5 = arith.truncf %4 : vector<144x128xf32> to vector<144x128xbf16>
    %c0_4 = arith.constant 0 : index
    %c0_5 = arith.constant 0 : index
    %6 = vector.load %arg4[%c0_4, %c0_5] : memref<144x128xbf16, #tpu.memory_space<vmem>>, vector<144x128xbf16>
    tpu.vector_store %arg4[%c0_4, %c0_5], %5 {strides = array<i32>} : memref<144x128xbf16, #tpu.memory_space<vmem>>, vector<144x128xbf16>,
    return
  }
  func.func @transform_0(%arg0: i32, %arg1: i32) -> (i32, i32) {
    %c0_i32 = arith.constant 0 : i32
    %c0_i32_0 = arith.constant 0 : i32
    return %arg0, %c0_i32 : i32, i32
  }
  func.func @transform_1(%arg0: i32, %arg1: i32) -> (i32, i32) {
    %c0_i32 = arith.constant 0 : i32
    %c0_i32_0 = arith.constant 0 : i32
    return %c0_i32, %arg1 : i32, i32
  }
  func.func @transform_2(%arg0: i32, %arg1: i32) -> (i32, i32) {
    %c0_i32 = arith.constant 0 : i32
    return %arg0, %arg1 : i32, i32
  }
}

module attributes {stable_mosaic.version = 11 : i64} {
  func.func @_matmul_kernel_single_k(%arg0: i32, %arg1: i32, %arg2: memref<64x512xbf16, #tpu.memory_space<vmem>>, %arg3: memref<512x128xbf16, #tpu.memory_space<vmem>>, %arg4: memref<64x128xf32, #tpu.memory_space<vmem>>) attributes {dimension_semantics = [#tpu.dimension_semantics<parallel>, #tpu.dimension_semantics<parallel>], iteration_bounds = array<i64: 2, 1>, scalar_prefetch = 0 : i64, scratch_operands = 0 : i64, tpu.core_type = #tpu.core_type<tc>, window_params = [{transform_indices = @transform_0, window_bounds = array<i64: 64, 512>}, {transform_indices = @transform_1, window_bounds = array<i64: 512, 128>}, {transform_indices = @transform_2, window_bounds = array<i64: 64, 128>}]} {
    %c0 = arith.constant 0 : index
    %c0_0 = arith.constant 0 : index
    %0 = vector.load %arg2[%c0, %c0_0] : memref<64x512xbf16, #tpu.memory_space<vmem>>, vector<64x512xbf16>
    %c0_1 = arith.constant 0 : index
    %c0_2 = arith.constant 0 : index
    %1 = vector.load %arg3[%c0_1, %c0_2] : memref<512x128xbf16, #tpu.memory_space<vmem>>, vector<512x128xbf16>
    %cst = arith.constant dense<0.000000e+00> : vector<64x128xf32>
    %2 = tpu.matmul %0, %1, %cst {dimension_numbers = #tpu.dot_dimension_numbers<[1], [0], [0], [1], [0, 0, 1, 1], [], []>} : vector<64x512xbf16>, vector<512x128xbf16>, vector<64x128xf32> -> vector<64x128xf32>
    %c0_3 = arith.constant 0 : index
    %c0_4 = arith.constant 0 : index
    %3 = vector.load %arg4[%c0_3, %c0_4] : memref<64x128xf32, #tpu.memory_space<vmem>>, vector<64x128xf32>
    tpu.vector_store %arg4[%c0_3, %c0_4], %2 {strides = array<i32>} : memref<64x128xf32, #tpu.memory_space<vmem>>, vector<64x128xf32>,
    return
  }
  func.func @transform_0(%arg0: i32, %arg1: i32) -> (i32, i32) {
    %c0_i32 = arith.constant 0 : i32
    %c0_i32_0 = arith.constant 0 : i32
    return %arg0, %c0_i32 : i32, i32
  }
  func.func @transform_1(%arg0: i32, %arg1: i32) -> (i32, i32) {
    %c0_i32 = arith.constant 0 : i32
    %c0_i32_0 = arith.constant 0 : i32
    return %c0_i32, %arg1 : i32, i32
  }
  func.func @transform_2(%arg0: i32, %arg1: i32) -> (i32, i32) {
    %c0_i32 = arith.constant 0 : i32
    return %arg0, %arg1 : i32, i32
  }
}

module attributes {stable_mosaic.version = 11 : i64} {
  func.func @_tail_kernel(%arg0: i32, %arg1: memref<64x128xf32, #tpu.memory_space<vmem>>, %arg2: memref<128x512xbf16, #tpu.memory_space<vmem>>, %arg3: memref<512x128xbf16, #tpu.memory_space<vmem>>, %arg4: memref<1x8x128xf32, #tpu.memory_space<vmem>>) attributes {dimension_semantics = [#tpu.dimension_semantics<parallel>], iteration_bounds = array<i64: 2>, scalar_prefetch = 0 : i64, scratch_operands = 0 : i64, tpu.core_type = #tpu.core_type<tc>, window_params = [{transform_indices = @transform_0, window_bounds = array<i64: 64, 128>}, {pipeline_mode = #tpu.pipeline_mode<synchronous>, transform_indices = @transform_1, window_bounds = array<i64: 128, 512>}, {pipeline_mode = #tpu.pipeline_mode<synchronous>, transform_indices = @transform_2, window_bounds = array<i64: 512, 128>}, {transform_indices = @transform_3, window_bounds = array<i64: 1, 8, 128>}]} {
    %c0 = arith.constant 0 : index
    %c0_0 = arith.constant 0 : index
    %0 = vector.load %arg1[%c0, %c0_0] : memref<64x128xf32, #tpu.memory_space<vmem>>, vector<64x128xf32>
    %cst = arith.constant 0.000000e+00 : f32
    %1 = vector.broadcast %cst : f32 to vector<64x128xf32>
    %2 = arith.maximumf %0, %1 : vector<64x128xf32>
    %cst_1 = arith.constant dense<0.000000e+00> : vector<128xf32>
    %3 = vector.multi_reduction <add>, %2, %cst_1 [0] : vector<64x128xf32> to vector<128xf32>
    %4 = vector.shape_cast %3 : vector<128xf32> to vector<1x128xf32>
    %cst_2 = arith.constant 6.400000e+01 : f32
    %5 = vector.broadcast %cst_2 : f32 to vector<1x128xf32>
    %6 = arith.divf %4, %5 : vector<1x128xf32>
    %7 = vector.shape_cast %6 : vector<1x128xf32> to vector<1x128xf32>
    %8 = vector.broadcast %7 : vector<1x128xf32> to vector<8x128xf32>
    %9 = arith.truncf %8 : vector<8x128xf32> to vector<8x128xbf16>
    %c0_3 = arith.constant 0 : index
    %c0_4 = arith.constant 0 : index
    %10 = vector.load %arg2[%c0_3, %c0_4] : memref<128x512xbf16, #tpu.memory_space<vmem>>, vector<128x512xbf16>
    %cst_5 = arith.constant dense<0.000000e+00> : vector<8x512xf32>
    %11 = tpu.matmul %9, %10, %cst_5 {dimension_numbers = #tpu.dot_dimension_numbers<[1], [0], [0], [1], [0, 0, 1, 1], [], []>} : vector<8x128xbf16>, vector<128x512xbf16>, vector<8x512xf32> -> vector<8x512xf32>
    %cst_6 = arith.constant 0.000000e+00 : f32
    %12 = vector.broadcast %cst_6 : f32 to vector<8x512xf32>
    %13 = arith.maximumf %11, %12 : vector<8x512xf32>
    %14 = arith.truncf %13 : vector<8x512xf32> to vector<8x512xbf16>
    %c0_7 = arith.constant 0 : index
    %c0_8 = arith.constant 0 : index
    %15 = vector.load %arg3[%c0_7, %c0_8] : memref<512x128xbf16, #tpu.memory_space<vmem>>, vector<512x128xbf16>
    %cst_9 = arith.constant dense<0.000000e+00> : vector<8x128xf32>
    %16 = tpu.matmul %14, %15, %cst_9 {dimension_numbers = #tpu.dot_dimension_numbers<[1], [0], [0], [1], [0, 0, 1, 1], [], []>} : vector<8x512xbf16>, vector<512x128xbf16>, vector<8x128xf32> -> vector<8x128xf32>
    %17 = vector.shape_cast %16 : vector<8x128xf32> to vector<1x8x128xf32>
    %c0_10 = arith.constant 0 : index
    %c0_11 = arith.constant 0 : index
    %c0_12 = arith.constant 0 : index
    %18 = vector.load %arg4[%c0_10, %c0_11, %c0_12] : memref<1x8x128xf32, #tpu.memory_space<vmem>>, vector<1x8x128xf32>
    tpu.vector_store %arg4[%c0_10, %c0_11, %c0_12], %17 {strides = array<i32>} : memref<1x8x128xf32, #tpu.memory_space<vmem>>, vector<1x8x128xf32>,
    return
  }
  func.func @transform_0(%arg0: i32) -> (i32, i32) {
    %c0_i32 = arith.constant 0 : i32
    %c0_i32_0 = arith.constant 0 : i32
    return %arg0, %c0_i32 : i32, i32
  }
  func.func @transform_1(%arg0: i32) -> (i32, i32) {
    %c0_i32 = arith.constant 0 : i32
    %c0_i32_0 = arith.constant 0 : i32
    %c0_i32_1 = arith.constant 0 : i32
    return %c0_i32, %c0_i32_0 : i32, i32
  }
  func.func @transform_2(%arg0: i32) -> (i32, i32) {
    %c0_i32 = arith.constant 0 : i32
    %c0_i32_0 = arith.constant 0 : i32
    %c0_i32_1 = arith.constant 0 : i32
    return %c0_i32, %c0_i32_0 : i32, i32
  }
  func.func @transform_3(%arg0: i32) -> (i32, i32, i32) {
    %c0_i32 = arith.constant 0 : i32
    %c0_i32_0 = arith.constant 0 : i32
    %c0_i32_1 = arith.constant 0 : i32
    return %arg0, %c0_i32, %c0_i32_0 : i32, i32, i32
  }
}

</mosaic_0001>

<llo_original>
// kernel: cifar_hash_convnet_forward.3
$region0: #{cifar_hash_convnet_forward.3}
  #allocation0 [shape = 'u32[]', space=smem, size = 0x4, offset = 0x4, fixed_abs, tag = 'smem constant byte address 0x4 - core index']
  #allocation1 [shape = 'u32[144,128]{1,0:T(1,128)}', space=vmem, size = 0x12000, scoped, tag = 'internal scratch']
  %s0 = inlined_call_operand.vmem [shape: bf16[288,128], index: 0, kind: input, shape index: {}]
  %s1 = inlined_call_operand.vmem [shape: bf16[128,128], index: 1, kind: input, shape index: {}]
  %s2 = inlined_call_operand.vmem [shape: bf16[288,128], index: 2, kind: output, shape index: {}]
  %s3 = sld [smem:[#allocation0]]
  $region41: #{cifar_hash_convnet_forward.3} parent=0
    _
  %s5 = ssub.s32 1, %s3
  %s6 = scalar_select 0, %s5, %s3
  loop: start=0, step=1, limit=4
  $region2: #{cifar_hash_convnet_forward.3} parent=0 // loop_pre_header
    _
  $region3: #{cifar_hash_convnet_forward.3} parent=0 // loop_header
    %s8 = sphi 0, %s12
    %p9 = scmp.ge.s32.totalorder %s8, 4
    %s15 = sphi 0, %s27
    %s16 = sphi 0, %s23
    %s17 = sphi 0, %s15
    %s18 = sphi 0, %s16
    %s19 = sphi 0, %s17
    %s20 = sphi 0, %s18
    %s30 = sphi 0, %s32
    %s33 = sphi 0, %s30
    %s34 = sphi 0, %s33
    %s50 = sphi 0, %s34
    %s56 = sphi 0, %s58
    %s59 = sphi 0, %s56
    %s60 = sphi 0, %s59
    %s76 = sphi 0, %s60
    %s84 = sphi 0, %s86
    %s87 = sphi 0, %s84
    %s88 = sphi 0, %s87
    %s104 = sphi 0, %s88
  $region4: #{cifar_hash_convnet_forward.3} parent=0 // loop_header_branch
    %11 = sbr.rel (%p9) target = $region8
  $region5: #{cifar_hash_convnet_forward.3} parent=0 // loop_body
    %s13 = ssub.s32 %s8, 1
    %s14 = ssub.s32 %s8, 2
    %s21 = sadd.s32 1, %s16
    %p22 = scmp.ge.s32.totalorder %s21, 1
    %s23 = scalar_select %p22, 0, %s21
    %s24 = sadd.s32 1, %s15
    %s25 = scalar_select %p22, %s24, %s15
    %p26 = scmp.ge.s32.totalorder %s25, 2
    %s27 = scalar_select %p26, 0, %s25
    %s28 = ssub.s32 %s15, %s27
    %p29 = scmp.eq.s32.totalorder %s28, 0
    %s31 = sadd.s32 %s30, 1
    %s32 = scalar_select %p29, %s30, %s31
    %p35 = pneg %p29
    %p36 = scmp.eq.s32.totalorder %s8, 1
    %p37 = por %p35, %p36
    %p38 = scmp.ne.s32.totalorder %s30, %s33
    %p39 = scmp.eq.s32.totalorder %s8, 0
    %p40 = por %p38, %p39
    %p41 = scmp.ne.s32.totalorder %s30, %s33
    %p42 = scmp.eq.s32.totalorder %s13, 1
    %p43 = por %p41, %p42
    %p44 = scmp.ne.s32.totalorder %s33, %s34
    %p45 = scmp.eq.s32.totalorder %s13, 0
    %p46 = por %p44, %p45
    %p47 = scmp.ne.s32.totalorder %s33, %s34
    %p48 = scmp.eq.s32.totalorder %s14, 1
    %p49 = por %p47, %p48
    %p51 = scmp.ne.s32.totalorder %s34, %s50
    %p52 = scmp.eq.s32.totalorder %s14, 0
    %p53 = por %p51, %p52
    %s54 = ssub.s32 %s16, %s23
    %p55 = scmp.eq.s32.totalorder %s54, 0
    %s57 = sadd.s32 %s56, 1
    %s58 = scalar_select %p55, %s56, %s57
    %p61 = pneg %p55
    %p62 = scmp.eq.s32.totalorder %s8, 1
    %p63 = por %p61, %p62
    %p64 = scmp.ne.s32.totalorder %s56, %s59
    %p65 = scmp.eq.s32.totalorder %s8, 0
    %p66 = por %p64, %p65
    %p67 = scmp.ne.s32.totalorder %s56, %s59
    %p68 = scmp.eq.s32.totalorder %s13, 1
    %p69 = por %p67, %p68
    %p70 = scmp.ne.s32.totalorder %s59, %s60
    %p71 = scmp.eq.s32.totalorder %s13, 0
    %p72 = por %p70, %p71
    %p73 = scmp.ne.s32.totalorder %s59, %s60
    %p74 = scmp.eq.s32.totalorder %s14, 1
    %p75 = por %p73, %p74
    %p77 = scmp.ne.s32.totalorder %s60, %s76
    %p78 = scmp.eq.s32.totalorder %s14, 0
    %p79 = por %p77, %p78
    %s80 = ssub.s32 %s15, %s27
    %s81 = ssub.s32 %s16, %s23
    %s82 = sor.u32 %s80, %s81
    %p83 = scmp.eq.s32.totalorder %s82, 0
    %s85 = sadd.s32 %s84, 1
    %s86 = scalar_select %p83, %s84, %s85
    %p89 = pneg %p83
    %p90 = scmp.eq.s32.totalorder %s8, 1
    %p91 = por %p89, %p90
    %p92 = scmp.ne.s32.totalorder %s84, %s87
    %p93 = scmp.eq.s32.totalorder %s8, 0
    %p94 = por %p92, %p93
    %p95 = scmp.ne.s32.totalorder %s84, %s87
    %p96 = scmp.eq.s32.totalorder %s13, 1
    %p97 = por %p95, %p96
    %p98 = scmp.ne.s32.totalorder %s87, %s88
    %p99 = scmp.eq.s32.totalorder %s13, 0
    %p100 = por %p98, %p99
    %p101 = scmp.ne.s32.totalorder %s87, %s88
    %p102 = scmp.eq.s32.totalorder %s14, 1
    %p103 = por %p101, %p102
    %p105 = scmp.ne.s32.totalorder %s88, %s104
    %p106 = scmp.eq.s32.totalorder %s14, 0
    %p107 = por %p105, %p106
    %p108 = scmp.le.s32.totalorder 1, %s8
    %p109 = scmp.lt.s32.totalorder %s8, 3
    %p110 = pnand %p108, %p109
    %p111 = pneg %p110
    // Predicated region
    $region9: #{cifar_hash_convnet_forward.3} parent=5 // pred_check
      _
    $region10: #{cifar_hash_convnet_forward.3} parent=5 // pred_check_branch
      %113 = sbr.rel (%p110) target = $region12
    $region11: #{cifar_hash_convnet_forward.3} parent=5 // pred_region
      %s114 = ssub.s32 %s8, 1
      // Predicated region
      $region13: #{cifar_hash_convnet_forward.3} parent=11 // pred_check
        %p115 = pneg %p72
      $region14: #{cifar_hash_convnet_forward.3} parent=11 // pred_check_branch
        %117 = sbr.rel (%p115) target = $region16
      $region15: #{cifar_hash_convnet_forward.3} parent=11 // pred_region
        %p118 = scmp.lt.s32.totalorder %s18, 0
        %s119 = scalar_select %p118, %s18, 0
        %s120 = smul.addr %s119, 4
        %s121 = scalar_lea.vmem %s1, %s120
      $region16: #{cifar_hash_convnet_forward.3} parent=11 // pred_fallthru
        _
    $region12: #{cifar_hash_convnet_forward.3} parent=5 // pred_fallthru
      _
    %p122 = scmp.lt.s32.totalorder %s8, 2
    // Predicated region
    $region17: #{cifar_hash_convnet_forward.3} parent=5 // pred_check
      %p123 = pneg %p122
    $region18: #{cifar_hash_convnet_forward.3} parent=5 // pred_check_branch
      %125 = sbr.rel (%p123) target = $region20
    $region19: #{cifar_hash_convnet_forward.3} parent=5 // pred_region
      // Predicated region
      $region21: #{cifar_hash_convnet_forward.3} parent=19 // pred_check
        %p126 = pneg %p40
      $region22: #{cifar_hash_convnet_forward.3} parent=19 // pred_check_branch
        %128 = sbr.rel (%p126) target = $region24
      $region23: #{cifar_hash_convnet_forward.3} parent=19 // pred_region
        %s129 = smul.u32 18, %s15
        %p130 = scmp.lt.s32.totalorder %s129, 35
        %s131 = scalar_select %p130, %s129, 35
        %s132 = smul.addr %s131, 4
        %s133 = scalar_lea.vmem %s0, %s132
        %s134 = smul.u32 18, %s15
      $region24: #{cifar_hash_convnet_forward.3} parent=19 // pred_fallthru
        _
    $region20: #{cifar_hash_convnet_forward.3} parent=5 // pred_fallthru
      _
    %p135 = scmp.le.s32.totalorder 1, %s8
    %p136 = scmp.lt.s32.totalorder %s8, 3
    %p137 = pnand %p135, %p136
    %p138 = pneg %p137
    // Predicated region
    $region25: #{cifar_hash_convnet_forward.3} parent=5 // pred_check
      _
    $region26: #{cifar_hash_convnet_forward.3} parent=5 // pred_check_branch
      %140 = sbr.rel (%p137) target = $region28
    $region27: #{cifar_hash_convnet_forward.3} parent=5 // pred_region
      %s141 = ssub.s32 %s8, 1
      %s142 = smul.u32 18, %s17
      %p143 = scmp.lt.s32.totalorder %s142, 35
      %s144 = scalar_select %p143, %s142, 35
      %s145 = smul.addr %s144, 4
      %s146 = scalar_lea.vmem %s0, %s145
      %p147 = pneg %p46
      %p148 = pneg %p43
      %p149 = scmp.lt.s32.totalorder %s18, 0
      %s150 = scalar_select %p149, %s18, 0
      %s151 = smul.addr %s150, 4
      %s152 = scalar_lea.vmem %s1, %s151
      %p153 = pneg %p72
      %p154 = pneg %p69
      %p155 = pneg %p100
      %p156 = pneg %p97
      %s157 = smul.u32 18, %s17
      %p158 = scmp.lt.s32.totalorder %s157, 35
      %s159 = scalar_select %p158, %s157, 35
      %p160 = scmp.lt.s32.totalorder %s18, 0
      %s161 = scalar_select %p160, %s18, 0
      %s162 = sadd.s32 %s161, %s159
      %s163 = smul.addr %s162, 4
      %s164 = scalar_lea.vmem %s2, %s163
      %s165 = smul.u32 18, %s17
      %p166 = scmp.lt.s32.totalorder %s165, 35
      %s167 = scalar_select %p166, %s165, 35
      %s168 = smul.addr %s167, 4
      %s169 = scalar_lea.vmem %s0, %s168
      %s170 = smul.u32 18, %s17
      %p171 = scmp.lt.s32.totalorder %s18, 0
      %s172 = scalar_select %p171, %s18, 0
      %s173 = smul.addr %s172, 4
      %s174 = scalar_lea.vmem %s1, %s173
      %s175 = smul.u32 18, %s17
      %p176 = scmp.lt.s32.totalorder %s175, 35
      %s177 = scalar_select %p176, %s175, 35
      %p178 = scmp.lt.s32.totalorder %s18, 0
      %s179 = scalar_select %p178, %s18, 0
      %s180 = sadd.s32 %s179, %s177
      %s181 = smul.addr %s180, 4
      %s182 = scalar_lea.vmem %s2, %s181
      %s183 = smul.u32 18, %s17
      %v185 = vld [vmem:[%s169] sm:$0xf]
      %v186 = vld [vmem:[%s169 + $0x4] sm:$0xf]
      %v187 = vld [vmem:[%s169 + $0x8] sm:$0xf]
      %v188 = vld [vmem:[%s169 + $0xc] sm:$0xf]
      %v189 = vld [vmem:[%s169 + $0x10] sm:$0xf]
      %v190 = vld [vmem:[%s169 + $0x14] sm:$0xf]
      %v191 = vld [vmem:[%s169 + $0x18] sm:$0xf]
      %v192 = vld [vmem:[%s169 + $0x1c] sm:$0xf]
      %v193 = vld [vmem:[%s169 + $0x20] sm:$0xf]
      %v194 = vld [vmem:[%s169 + $0x24] sm:$0xf]
      %v195 = vld [vmem:[%s169 + $0x28] sm:$0xf]
      %v196 = vld [vmem:[%s169 + $0x2c] sm:$0xf]
      %v197 = vld [vmem:[%s169 + $0x30] sm:$0xf]
      %v198 = vld [vmem:[%s169 + $0x34] sm:$0xf]
      %v199 = vld [vmem:[%s169 + $0x38] sm:$0xf]
      %v200 = vld [vmem:[%s169 + $0x3c] sm:$0xf]
      %v201 = vld [vmem:[%s169 + $0x40] sm:$0xf]
      %v202 = vld [vmem:[%s169 + $0x44] sm:$0xf]
      %v203 = vld [vmem:[%s174] sm:$0xf]
      %v204 = vld [vmem:[%s174 + $0x4] sm:$0xf]
      %v205 = vld [vmem:[%s174 + $0x8] sm:$0xf]
      %v206 = vld [vmem:[%s174 + $0xc] sm:$0xf]
      %v207 = vld [vmem:[%s174 + $0x10] sm:$0xf]
      %v208 = vld [vmem:[%s174 + $0x14] sm:$0xf]
      %v209 = vld [vmem:[%s174 + $0x18] sm:$0xf]
      %v210 = vld [vmem:[%s174 + $0x1c] sm:$0xf]
      %v211 = vld [vmem:[%s174 + $0x20] sm:$0xf]
      %v212 = vld [vmem:[%s174 + $0x24] sm:$0xf]
      %v213 = vld [vmem:[%s174 + $0x28] sm:$0xf]
      %v214 = vld [vmem:[%s174 + $0x2c] sm:$0xf]
      %v215 = vld [vmem:[%s174 + $0x30] sm:$0xf]
      %v216 = vld [vmem:[%s174 + $0x34] sm:$0xf]
      %v217 = vld [vmem:[%s174 + $0x38] sm:$0xf]
      %v218 = vld [vmem:[%s174 + $0x3c] sm:$0xf]
      %v237 = vunpack.c.l.b16 %v185
      %v238 = vunpack.c.l.b16 %v186
      %v239 = vunpack.c.l.b16 %v187
      %v240 = vunpack.c.l.b16 %v188
      %v241 = vunpack.c.l.b16 %v189
      %v242 = vunpack.c.l.b16 %v190
      %v243 = vunpack.c.l.b16 %v191
      %v244 = vunpack.c.l.b16 %v192
      %v245 = vunpack.c.l.b16 %v193
      %v246 = vunpack.c.l.b16 %v194
      %v247 = vunpack.c.l.b16 %v195
      %v248 = vunpack.c.l.b16 %v196
      %v249 = vunpack.c.l.b16 %v197
      %v250 = vunpack.c.l.b16 %v198
      %v251 = vunpack.c.l.b16 %v199
      %v252 = vunpack.c.l.b16 %v200
      %v253 = vunpack.c.l.b16 %v201
      %v254 = vunpack.c.l.b16 %v202
      %v255 = vpack.c.b16 %v238, %v237
      %v256 = vpack.c.b16 %v240, %v239
      %v257 = vpack.c.b16 %v242, %v241
      %v258 = vpack.c.b16 %v244, %v243
      %v259 = vpack.c.b16 %v246, %v245
      %v260 = vpack.c.b16 %v248, %v247
      %v261 = vpack.c.b16 %v250, %v249
      %v262 = vpack.c.b16 %v252, %v251
      %v263 = vpack.c.b16 %v254, %v253
      %v289 = vunpack.c.l.b16 %v203
      %v290 = vunpack.c.l.b16 %v204
      %v291 = vunpack.c.l.b16 %v205
      %v292 = vunpack.c.l.b16 %v206
      %v293 = vunpack.c.l.b16 %v207
      %v294 = vunpack.c.l.b16 %v208
      %v295 = vunpack.c.l.b16 %v209
      %v296 = vunpack.c.l.b16 %v210
      %v297 = vunpack.c.l.b16 %v211
      %v298 = vunpack.c.l.b16 %v212
      %v299 = vunpack.c.l.b16 %v213
      %v300 = vunpack.c.l.b16 %v214
      %v301 = vunpack.c.l.b16 %v215
      %v302 = vunpack.c.l.b16 %v216
      %v303 = vunpack.c.l.b16 %v217
      %v304 = vunpack.c.l.b16 %v218
      %v305 = vpack.c.b16 %v290, %v289
      %v306 = vpack.c.b16 %v292, %v291
      %v307 = vpack.c.b16 %v294, %v293
      %v308 = vpack.c.b16 %v296, %v295
      %v309 = vpack.c.b16 %v298, %v297
      %v310 = vpack.c.b16 %v300, %v299
      %v311 = vpack.c.b16 %v302, %v301
      %v312 = vpack.c.b16 %v304, %v303
      %321 = vmatprep.subr.bf16.mxu0 0
      %322 = vmatpush1.bf16.msra.mxu0 %v305
      %323 = vmatprep.subr.bf16.mxu0 0
      %324 = vmatpush1.bf16.msra.mxu0 %v306
      %325 = vmatprep.subr.bf16.mxu0 0
      %326 = vmatpush1.bf16.msra.mxu0 %v307
      %327 = vmatprep.subr.bf16.mxu0 0
      %328 = vmatpush1.bf16.msra.mxu0 %v308
      %329 = vmatprep.subr.bf16.mxu0 0
      %330 = vmatpush1.bf16.msra.mxu0 %v309
      %331 = vmatprep.subr.bf16.mxu0 0
      %332 = vmatpush1.bf16.msra.mxu0 %v310
      %333 = vmatprep.subr.bf16.mxu0 0
      %334 = vmatpush1.bf16.msra.mxu0 %v311
      %335 = vmatprep.subr.bf16.mxu0 0
      %336 = vmatpush1.bf16.msra.mxu0 %v312
      %337 = vmatprep.subr.bf16.mxu0 0
      %338 = vmatpush1.bf16.msra.mxu0 0
      %339 = vmatprep.subr.bf16.mxu0 0
      %340 = vmatpush1.bf16.msra.mxu0 0
      %341 = vmatprep.subr.bf16.mxu0 0
      %342 = vmatpush1.bf16.msra.mxu0 0
      %343 = vmatprep.subr.bf16.mxu0 0
      %344 = vmatpush1.bf16.msra.mxu0 0
      %345 = vmatprep.subr.bf16.mxu0 0
      %346 = vmatpush1.bf16.msra.mxu0 0
      %347 = vmatprep.subr.bf16.mxu0 0
      %348 = vmatpush1.bf16.msra.mxu0 0
      %349 = vmatprep.subr.bf16.mxu0 0
      %350 = vmatpush1.bf16.msra.mxu0 0
      %351 = vmatprep.subr.bf16.mxu0 0
      %352 = vmatpush1.bf16.msra.mxu0 0
      %353 = vmatprep.mubr.bf16.mxu0 0
      %354 = vmatmul.mubr.bf16.gmra.mrb[0].mxu0 %v255
      %v355 = vpop.f32.mrb[0].mxu0
      %v356 = vadd.f32 0.0, %v355
      %v357 = vpop.f32.mrb[0].mxu0
      %v358 = vpop.f32.mrb[0].mxu0
      %v359 = vadd.f32 0.0, %v358
      %v360 = vpop.f32.mrb[0].mxu0
      %361 = vmatprep.mubr.bf16.mxu0 0
      %362 = vmatmul.mubr.bf16.gmra.mrb[0].mxu0 %v256
      %v363 = vpop.f32.mrb[0].mxu0
      %v364 = vadd.f32 0.0, %v363
      %v365 = vpop.f32.mrb[0].mxu0
      %v366 = vpop.f32.mrb[0].mxu0
      %v367 = vadd.f32 0.0, %v366
      %v368 = vpop.f32.mrb[0].mxu0
      %369 = vmatprep.mubr.bf16.mxu0 0
      %370 = vmatmul.mubr.bf16.gmra.mrb[0].mxu0 %v257
      %v371 = vpop.f32.mrb[0].mxu0
      %v372 = vadd.f32 0.0, %v371
      %v373 = vpop.f32.mrb[0].mxu0
      %v374 = vpop.f32.mrb[0].mxu0
      %v375 = vadd.f32 0.0, %v374
      %v376 = vpop.f32.mrb[0].mxu0
      %377 = vmatprep.mubr.bf16.mxu0 0
      %378 = vmatmul.mubr.bf16.gmra.mrb[0].mxu0 %v258
      %v379 = vpop.f32.mrb[0].mxu0
      %v380 = vadd.f32 0.0, %v379
      %v381 = vpop.f32.mrb[0].mxu0
      %v382 = vpop.f32.mrb[0].mxu0
      %v383 = vadd.f32 0.0, %v382
      %v384 = vpop.f32.mrb[0].mxu0
      %385 = vmatprep.mubr.bf16.mxu0 0
      %386 = vmatmul.mubr.bf16.gmra.mrb[0].mxu0 %v259
      %v387 = vpop.f32.mrb[0].mxu0
      %v388 = vadd.f32 0.0, %v387
      %v389 = vpop.f32.mrb[0].mxu0
      %v390 = vpop.f32.mrb[0].mxu0
      %v391 = vadd.f32 0.0, %v390
      %v392 = vpop.f32.mrb[0].mxu0
      %393 = vmatprep.mubr.bf16.mxu0 0
      %394 = vmatmul.mubr.bf16.gmra.mrb[0].mxu0 %v260
      %v395 = vpop.f32.mrb[0].mxu0
      %v396 = vadd.f32 0.0, %v395
      %v397 = vpop.f32.mrb[0].mxu0
      %v398 = vpop.f32.mrb[0].mxu0
      %v399 = vadd.f32 0.0, %v398
      %v400 = vpop.f32.mrb[0].mxu0
      %401 = vmatprep.mubr.bf16.mxu0 0
      %402 = vmatmul.mubr.bf16.gmra.mrb[0].mxu0 %v261
      %v403 = vpop.f32.mrb[0].mxu0
      %v404 = vadd.f32 0.0, %v403
      %v405 = vpop.f32.mrb[0].mxu0
      %v406 = vpop.f32.mrb[0].mxu0
      %v407 = vadd.f32 0.0, %v406
      %v408 = vpop.f32.mrb[0].mxu0
      %409 = vmatprep.mubr.bf16.mxu0 0
      %410 = vmatmul.mubr.bf16.gmra.mrb[0].mxu0 %v262
      %v411 = vpop.f32.mrb[0].mxu0
      %v412 = vadd.f32 0.0, %v411
      %v413 = vpop.f32.mrb[0].mxu0
      %v414 = vpop.f32.mrb[0].mxu0
      %v415 = vadd.f32 0.0, %v414
      %v416 = vpop.f32.mrb[0].mxu0
      %417 = vmatprep.mubr.bf16.mxu0 0
      %418 = vmatmul.mubr.bf16.gmra.mrb[0].mxu0 %v263
      %v419 = vpop.f32.mrb[0].mxu0
      %v420 = vadd.f32 0.0, %v419
      %v421 = vpop.f32.mrb[0].mxu0
      %v422 = vpop.f32.mrb[0].mxu0
      %v423 = vadd.f32 0.0, %v422
      %v424 = vpop.f32.mrb[0].mxu0
      %425 = vdwg.mxu0
      %v426 = vmax.f32 %v356, 0.0
      %v427 = vmax.f32 %v359, 0.0
      %v428 = vmax.f32 %v364, 0.0
      %v429 = vmax.f32 %v367, 0.0
      %v430 = vmax.f32 %v372, 0.0
      %v431 = vmax.f32 %v375, 0.0
      %v432 = vmax.f32 %v380, 0.0
      %v433 = vmax.f32 %v383, 0.0
      %v434 = vmax.f32 %v388, 0.0
      %v435 = vmax.f32 %v391, 0.0
      %v436 = vmax.f32 %v396, 0.0
      %v437 = vmax.f32 %v399, 0.0
      %v438 = vmax.f32 %v404, 0.0
      %v439 = vmax.f32 %v407, 0.0
      %v440 = vmax.f32 %v412, 0.0
      %v441 = vmax.f32 %v415, 0.0
      %v442 = vmax.f32 %v420, 0.0
      %v443 = vmax.f32 %v423, 0.0
      %v444 = vpack.c.bf16 %v427, %v426
      %v445 = vpack.c.bf16 %v429, %v428
      %v446 = vpack.c.bf16 %v431, %v430
      %v447 = vpack.c.bf16 %v433, %v432
      %v448 = vpack.c.bf16 %v435, %v434
      %v449 = vpack.c.bf16 %v437, %v436
      %v450 = vpack.c.bf16 %v439, %v438
      %v451 = vpack.c.bf16 %v441, %v440
      %v452 = vpack.c.bf16 %v443, %v442
      %v462 = vunpack.c.l.b16 %v444
      %v463 = vunpack.c.h.b16 %v444
      %v464 = vunpack.c.l.b16 %v445
      %v465 = vunpack.c.h.b16 %v445
      %v466 = vunpack.c.l.b16 %v446
      %v467 = vunpack.c.h.b16 %v446
      %v468 = vunpack.c.l.b16 %v447
      %v469 = vunpack.c.h.b16 %v447
      %v470 = vunpack.c.l.b16 %v448
      %v471 = vunpack.c.h.b16 %v448
      %v472 = vunpack.c.l.b16 %v449
      %v473 = vunpack.c.h.b16 %v449
      %v474 = vunpack.c.l.b16 %v450
      %v475 = vunpack.c.h.b16 %v450
      %v476 = vunpack.c.l.b16 %v451
      %v477 = vunpack.c.h.b16 %v451
      %v478 = vunpack.c.l.b16 %v452
      %v479 = vunpack.c.h.b16 %v452
      %v480 = vpack.c.b16 %v462, %v462
      %v481 = vpack.c.b16 %v463, %v463
      %v482 = vpack.c.b16 %v464, %v464
      %v483 = vpack.c.b16 %v465, %v465
      %v484 = vpack.c.b16 %v466, %v466
      %v485 = vpack.c.b16 %v467, %v467
      %v486 = vpack.c.b16 %v468, %v468
      %v487 = vpack.c.b16 %v469, %v469
      %v488 = vpack.c.b16 %v470, %v470
      %v489 = vpack.c.b16 %v471, %v471
      %v490 = vpack.c.b16 %v472, %v472
      %v491 = vpack.c.b16 %v473, %v473
      %v492 = vpack.c.b16 %v474, %v474
      %v493 = vpack.c.b16 %v475, %v475
      %v494 = vpack.c.b16 %v476, %v476
      %v495 = vpack.c.b16 %v477, %v477
      %v496 = vpack.c.b16 %v478, %v478
      %v497 = vpack.c.b16 %v479, %v479
      %516 = vst [vmem:[%s182] sm:$0xf] %v480
      %517 = vst [vmem:[%s182 + $0x4] sm:$0xf] %v481
      %518 = vst [vmem:[%s182 + $0x8] sm:$0xf] %v482
      %519 = vst [vmem:[%s182 + $0xc] sm:$0xf] %v483
      %520 = vst [vmem:[%s182 + $0x10] sm:$0xf] %v484
      %521 = vst [vmem:[%s182 + $0x14] sm:$0xf] %v485
      %522 = vst [vmem:[%s182 + $0x18] sm:$0xf] %v486
      %523 = vst [vmem:[%s182 + $0x1c] sm:$0xf] %v487
      %524 = vst [vmem:[%s182 + $0x20] sm:$0xf] %v488
      %525 = vst [vmem:[%s182 + $0x24] sm:$0xf] %v489
      %526 = vst [vmem:[%s182 + $0x28] sm:$0xf] %v490
      %527 = vst [vmem:[%s182 + $0x2c] sm:$0xf] %v491
      %528 = vst [vmem:[%s182 + $0x30] sm:$0xf] %v492
      %529 = vst [vmem:[%s182 + $0x34] sm:$0xf] %v493
      %530 = vst [vmem:[%s182 + $0x38] sm:$0xf] %v494
      %531 = vst [vmem:[%s182 + $0x3c] sm:$0xf] %v495
      %532 = vst [vmem:[%s182 + $0x40] sm:$0xf] %v496
      %533 = vst [vmem:[%s182 + $0x44] sm:$0xf] %v497
      %s534 = smul.u32 18, %s17
      %p535 = scmp.lt.s32.totalorder %s534, 35
      %s536 = scalar_select %p535, %s534, 35
      %p537 = scmp.lt.s32.totalorder %s18, 0
      %s538 = scalar_select %p537, %s18, 0
      %s539 = sadd.s32 %s538, %s536
      %s540 = smul.addr %s539, 4
      %s541 = scalar_lea.vmem %s2, %s540
      // Predicated region
      $region29: #{cifar_hash_convnet_forward.3} parent=27 // pred_check
        %p542 = pneg %p97
      $region30: #{cifar_hash_convnet_forward.3} parent=27 // pred_check_branch
        %544 = sbr.rel (%p542) target = $region32
      $region31: #{cifar_hash_convnet_forward.3} parent=27 // pred_region
        %s545 = smul.u32 18, %s17
      $region32: #{cifar_hash_convnet_forward.3} parent=27 // pred_fallthru
        _
    $region28: #{cifar_hash_convnet_forward.3} parent=5 // pred_fallthru
      _
    %p546 = scmp.le.s32.totalorder 2, %s8
    // Predicated region
    $region33: #{cifar_hash_convnet_forward.3} parent=5 // pred_check
      %p547 = pneg %p546
    $region34: #{cifar_hash_convnet_forward.3} parent=5 // pred_check_branch
      %549 = sbr.rel (%p547) target = $region36
    $region35: #{cifar_hash_convnet_forward.3} parent=5 // pred_region
      %s550 = ssub.s32 %s8, 2
      // Predicated region
      $region37: #{cifar_hash_convnet_forward.3} parent=35 // pred_check
        %p551 = pneg %p103
      $region38: #{cifar_hash_convnet_forward.3} parent=35 // pred_check_branch
        %553 = sbr.rel (%p551) target = $region40
      $region39: #{cifar_hash_convnet_forward.3} parent=35 // pred_region
        %s554 = smul.u32 18, %s19
        %p555 = scmp.lt.s32.totalorder %s554, 35
        %s556 = scalar_select %p555, %s554, 35
        %p557 = scmp.lt.s32.totalorder %s20, 0
        %s558 = scalar_select %p557, %s20, 0
        %s559 = sadd.s32 %s558, %s556
        %s560 = smul.addr %s559, 4
        %s561 = scalar_lea.vmem %s2, %s560
      $region40: #{cifar_hash_convnet_forward.3} parent=35 // pred_fallthru
        _
    $region36: #{cifar_hash_convnet_forward.3} parent=5 // pred_fallthru
      _
  $region6: #{cifar_hash_convnet_forward.3} parent=0 // loop_footer
    %s12 = sadd.s32 1, %s8
  $region7: #{cifar_hash_convnet_forward.3} parent=0 // loop_footer_branch
    %7 = sbr.rel target = $region3
  $region8: #{cifar_hash_convnet_forward.3} parent=0 // loop_exit
    _

// kernel: cifar_hash_convnet_forward.4
$region0: #{cifar_hash_convnet_forward.4}
  #allocation0 [shape = 'u32[]', space=smem, size = 0x4, offset = 0x4, fixed_abs, tag = 'smem constant byte address 0x4 - core index']
  #allocation1 [shape = 'u32[144,128]{1,0:T(1,128)}', space=vmem, size = 0x12000, scoped, tag = 'internal scratch']
  %s0 = inlined_call_operand.vmem [shape: bf16[128,512], index: 0, kind: input, shape index: {}]
  %s1 = inlined_call_operand.vmem [shape: bf16[512,128], index: 1, kind: input, shape index: {}]
  %s2 = inlined_call_operand.vmem [shape: f32[128,128], index: 2, kind: output, shape index: {}]
  %s3 = sld [smem:[#allocation0]]
  $region41: #{cifar_hash_convnet_forward.4} parent=0
    _
  %s5 = ssub.s32 1, %s3
  %s6 = scalar_select 0, %s5, %s3
  loop: start=0, step=1, limit=4
  $region2: #{cifar_hash_convnet_forward.4} parent=0 // loop_pre_header
    _
  $region3: #{cifar_hash_convnet_forward.4} parent=0 // loop_header
    %s8 = sphi 0, %s12
    %p9 = scmp.ge.s32.totalorder %s8, 4
    %s15 = sphi 0, %s27
    %s16 = sphi 0, %s23
    %s17 = sphi 0, %s15
    %s18 = sphi 0, %s16
    %s19 = sphi 0, %s17
    %s20 = sphi 0, %s18
    %s30 = sphi 0, %s32
    %s33 = sphi 0, %s30
    %s34 = sphi 0, %s33
    %s50 = sphi 0, %s34
    %s56 = sphi 0, %s58
    %s59 = sphi 0, %s56
    %s60 = sphi 0, %s59
    %s76 = sphi 0, %s60
    %s84 = sphi 0, %s86
    %s87 = sphi 0, %s84
    %s88 = sphi 0, %s87
    %s104 = sphi 0, %s88
  $region4: #{cifar_hash_convnet_forward.4} parent=0 // loop_header_branch
    %11 = sbr.rel (%p9) target = $region8
  $region5: #{cifar_hash_convnet_forward.4} parent=0 // loop_body
    %s13 = ssub.s32 %s8, 1
    %s14 = ssub.s32 %s8, 2
    %s21 = sadd.s32 1, %s16
    %p22 = scmp.ge.s32.totalorder %s21, 1
    %s23 = scalar_select %p22, 0, %s21
    %s24 = sadd.s32 1, %s15
    %s25 = scalar_select %p22, %s24, %s15
    %p26 = scmp.ge.s32.totalorder %s25, 2
    %s27 = scalar_select %p26, 0, %s25
    %s28 = ssub.s32 %s15, %s27
    %p29 = scmp.eq.s32.totalorder %s28, 0
    %s31 = sadd.s32 %s30, 1
    %s32 = scalar_select %p29, %s30, %s31
    %p35 = pneg %p29
    %p36 = scmp.eq.s32.totalorder %s8, 1
    %p37 = por %p35, %p36
    %p38 = scmp.ne.s32.totalorder %s30, %s33
    %p39 = scmp.eq.s32.totalorder %s8, 0
    %p40 = por %p38, %p39
    %p41 = scmp.ne.s32.totalorder %s30, %s33
    %p42 = scmp.eq.s32.totalorder %s13, 1
    %p43 = por %p41, %p42
    %p44 = scmp.ne.s32.totalorder %s33, %s34
    %p45 = scmp.eq.s32.totalorder %s13, 0
    %p46 = por %p44, %p45
    %p47 = scmp.ne.s32.totalorder %s33, %s34
    %p48 = scmp.eq.s32.totalorder %s14, 1
    %p49 = por %p47, %p48
    %p51 = scmp.ne.s32.totalorder %s34, %s50
    %p52 = scmp.eq.s32.totalorder %s14, 0
    %p53 = por %p51, %p52
    %s54 = ssub.s32 %s16, %s23
    %p55 = scmp.eq.s32.totalorder %s54, 0
    %s57 = sadd.s32 %s56, 1
    %s58 = scalar_select %p55, %s56, %s57
    %p61 = pneg %p55
    %p62 = scmp.eq.s32.totalorder %s8, 1
    %p63 = por %p61, %p62
    %p64 = scmp.ne.s32.totalorder %s56, %s59
    %p65 = scmp.eq.s32.totalorder %s8, 0
    %p66 = por %p64, %p65
    %p67 = scmp.ne.s32.totalorder %s56, %s59
    %p68 = scmp.eq.s32.totalorder %s13, 1
    %p69 = por %p67, %p68
    %p70 = scmp.ne.s32.totalorder %s59, %s60
    %p71 = scmp.eq.s32.totalorder %s13, 0
    %p72 = por %p70, %p71
    %p73 = scmp.ne.s32.totalorder %s59, %s60
    %p74 = scmp.eq.s32.totalorder %s14, 1
    %p75 = por %p73, %p74
    %p77 = scmp.ne.s32.totalorder %s60, %s76
    %p78 = scmp.eq.s32.totalorder %s14, 0
    %p79 = por %p77, %p78
    %s80 = ssub.s32 %s15, %s27
    %s81 = ssub.s32 %s16, %s23
    %s82 = sor.u32 %s80, %s81
    %p83 = scmp.eq.s32.totalorder %s82, 0
    %s85 = sadd.s32 %s84, 1
    %s86 = scalar_select %p83, %s84, %s85
    %p89 = pneg %p83
    %p90 = scmp.eq.s32.totalorder %s8, 1
    %p91 = por %p89, %p90
    %p92 = scmp.ne.s32.totalorder %s84, %s87
    %p93 = scmp.eq.s32.totalorder %s8, 0
    %p94 = por %p92, %p93
    %p95 = scmp.ne.s32.totalorder %s84, %s87
    %p96 = scmp.eq.s32.totalorder %s13, 1
    %p97 = por %p95, %p96
    %p98 = scmp.ne.s32.totalorder %s87, %s88
    %p99 = scmp.eq.s32.totalorder %s13, 0
    %p100 = por %p98, %p99
    %p101 = scmp.ne.s32.totalorder %s87, %s88
    %p102 = scmp.eq.s32.totalorder %s14, 1
    %p103 = por %p101, %p102
    %p105 = scmp.ne.s32.totalorder %s88, %s104
    %p106 = scmp.eq.s32.totalorder %s14, 0
    %p107 = por %p105, %p106
    %p108 = scmp.le.s32.totalorder 1, %s8
    %p109 = scmp.lt.s32.totalorder %s8, 3
    %p110 = pnand %p108, %p109
    %p111 = pneg %p110
    // Predicated region
    $region9: #{cifar_hash_convnet_forward.4} parent=5 // pred_check
      _
    $region10: #{cifar_hash_convnet_forward.4} parent=5 // pred_check_branch
      %113 = sbr.rel (%p110) target = $region12
    $region11: #{cifar_hash_convnet_forward.4} parent=5 // pred_region
      %s114 = ssub.s32 %s8, 1
      // Predicated region
      $region13: #{cifar_hash_convnet_forward.4} parent=11 // pred_check
        %p115 = pneg %p72
      $region14: #{cifar_hash_convnet_forward.4} parent=11 // pred_check_branch
        %117 = sbr.rel (%p115) target = $region16
      $region15: #{cifar_hash_convnet_forward.4} parent=11 // pred_region
        %p118 = scmp.lt.s32.totalorder %s18, 0
        %s119 = scalar_select %p118, %s18, 0
        %s120 = smul.addr %s119, 4
        %s121 = scalar_lea.vmem %s1, %s120
      $region16: #{cifar_hash_convnet_forward.4} parent=11 // pred_fallthru
        _
    $region12: #{cifar_hash_convnet_forward.4} parent=5 // pred_fallthru
      _
    %p122 = scmp.lt.s32.totalorder %s8, 2
    // Predicated region
    $region17: #{cifar_hash_convnet_forward.4} parent=5 // pred_check
      %p123 = pneg %p122
    $region18: #{cifar_hash_convnet_forward.4} parent=5 // pred_check_branch
      %125 = sbr.rel (%p123) target = $region20
    $region19: #{cifar_hash_convnet_forward.4} parent=5 // pred_region
      // Predicated region
      $region21: #{cifar_hash_convnet_forward.4} parent=19 // pred_check
        %p126 = pneg %p40
      $region22: #{cifar_hash_convnet_forward.4} parent=19 // pred_check_branch
        %128 = sbr.rel (%p126) target = $region24
      $region23: #{cifar_hash_convnet_forward.4} parent=19 // pred_region
        %s129 = smul.u32 8, %s15
        %p130 = scmp.lt.s32.totalorder %s129, 15
        %s131 = scalar_select %p130, %s129, 15
        %s132 = smul.addr %s131, 4
        %s133 = smul.addr %s132, 4
        %s134 = scalar_lea.vmem %s0, %s133
        %s135 = smul.u32 8, %s15
      $region24: #{cifar_hash_convnet_forward.4} parent=19 // pred_fallthru
        _
    $region20: #{cifar_hash_convnet_forward.4} parent=5 // pred_fallthru
      _
    %p136 = scmp.le.s32.totalorder 1, %s8
    %p137 = scmp.lt.s32.totalorder %s8, 3
    %p138 = pnand %p136, %p137
    %p139 = pneg %p138
    // Predicated region
    $region25: #{cifar_hash_convnet_forward.4} parent=5 // pred_check
      _
    $region26: #{cifar_hash_convnet_forward.4} parent=5 // pred_check_branch
      %141 = sbr.rel (%p138) target = $region28
    $region27: #{cifar_hash_convnet_forward.4} parent=5 // pred_region
      %s142 = ssub.s32 %s8, 1
      %s143 = smul.u32 8, %s17
      %p144 = scmp.lt.s32.totalorder %s143, 15
      %s145 = scalar_select %p144, %s143, 15
      %s146 = smul.addr %s145, 4
      %s147 = smul.addr %s146, 4
      %s148 = scalar_lea.vmem %s0, %s147
      %p149 = pneg %p46
      %p150 = pneg %p43
      %p151 = scmp.lt.s32.totalorder %s18, 0
      %s152 = scalar_select %p151, %s18, 0
      %s153 = smul.addr %s152, 4
      %s154 = scalar_lea.vmem %s1, %s153
      %p155 = pneg %p72
      %p156 = pneg %p69
      %p157 = pneg %p100
      %p158 = pneg %p97
      %s159 = smul.u32 8, %s17
      %p160 = scmp.lt.s32.totalorder %s159, 15
      %s161 = scalar_select %p160, %s159, 15
      %p162 = scmp.lt.s32.totalorder %s18, 0
      %s163 = scalar_select %p162, %s18, 0
      %s164 = sadd.s32 %s163, %s161
      %s165 = smul.addr %s164, 8
      %s166 = scalar_lea.vmem %s2, %s165
      %s167 = smul.u32 8, %s17
      %p168 = scmp.lt.s32.totalorder %s167, 15
      %s169 = scalar_select %p168, %s167, 15
      %s170 = smul.addr %s169, 4
      %s171 = smul.addr %s170, 4
      %s172 = scalar_lea.vmem %s0, %s171
      %s173 = smul.u32 8, %s17
      %p174 = scmp.lt.s32.totalorder %s18, 0
      %s175 = scalar_select %p174, %s18, 0
      %s176 = smul.addr %s175, 4
      %s177 = scalar_lea.vmem %s1, %s176
      %s178 = smul.u32 8, %s17
      %p179 = scmp.lt.s32.totalorder %s178, 15
      %s180 = scalar_select %p179, %s178, 15
      %p181 = scmp.lt.s32.totalorder %s18, 0
      %s182 = scalar_select %p181, %s18, 0
      %s183 = sadd.s32 %s182, %s180
      %s184 = smul.addr %s183, 8
      %s185 = scalar_lea.vmem %s2, %s184
      %s186 = smul.u32 8, %s17
      %v188 = vld [vmem:[%s172] sm:$0xff]
      %v189 = vld [vmem:[%s172 + $0x8] sm:$0xff]
      %v190 = vld [vmem:[%s172 + $0x10] sm:$0xff]
      %v191 = vld [vmem:[%s172 + $0x18] sm:$0xff]
      %v192 = vld [vmem:[%s172 + $0x20] sm:$0xff]
      %v193 = vld [vmem:[%s172 + $0x28] sm:$0xff]
      %v194 = vld [vmem:[%s172 + $0x30] sm:$0xff]
      %v195 = vld [vmem:[%s172 + $0x38] sm:$0xff]
      %v196 = vld [vmem:[%s172 + $0x40] sm:$0xff]
      %v197 = vld [vmem:[%s172 + $0x48] sm:$0xff]
      %v198 = vld [vmem:[%s172 + $0x50] sm:$0xff]
      %v199 = vld [vmem:[%s172 + $0x58] sm:$0xff]
      %v200 = vld [vmem:[%s172 + $0x60] sm:$0xff]
      %v201 = vld [vmem:[%s172 + $0x68] sm:$0xff]
      %v202 = vld [vmem:[%s172 + $0x70] sm:$0xff]
      %v203 = vld [vmem:[%s172 + $0x78] sm:$0xff]
      %v204 = vld [vmem:[%s177] sm:$0xf]
      %v205 = vld [vmem:[%s177 + $0x4] sm:$0xf]
      %v206 = vld [vmem:[%s177 + $0x8] sm:$0xf]
      %v207 = vld [vmem:[%s177 + $0xc] sm:$0xf]
      %v208 = vld [vmem:[%s177 + $0x10] sm:$0xf]
      %v209 = vld [vmem:[%s177 + $0x14] sm:$0xf]
      %v210 = vld [vmem:[%s177 + $0x18] sm:$0xf]
      %v211 = vld [vmem:[%s177 + $0x1c] sm:$0xf]
      %v212 = vld [vmem:[%s177 + $0x20] sm:$0xf]
      %v213 = vld [vmem:[%s177 + $0x24] sm:$0xf]
      %v214 = vld [vmem:[%s177 + $0x28] sm:$0xf]
      %v215 = vld [vmem:[%s177 + $0x2c] sm:$0xf]
      %v216 = vld [vmem:[%s177 + $0x30] sm:$0xf]
      %v217 = vld [vmem:[%s177 + $0x34] sm:$0xf]
      %v218 = vld [vmem:[%s177 + $0x38] sm:$0xf]
      %v219 = vld [vmem:[%s177 + $0x3c] sm:$0xf]
      %v220 = vld [vmem:[%s177 + $0x40] sm:$0xf]
      %v221 = vld [vmem:[%s177 + $0x44] sm:$0xf]
      %v222 = vld [vmem:[%s177 + $0x48] sm:$0xf]
      %v223 = vld [vmem:[%s177 + $0x4c] sm:$0xf]
      %v224 = vld [vmem:[%s177 + $0x50] sm:$0xf]
      %v225 = vld [vmem:[%s177 + $0x54] sm:$0xf]
      %v226 = vld [vmem:[%s177 + $0x58] sm:$0xf]
      %v227 = vld [vmem:[%s177 + $0x5c] sm:$0xf]
      %v228 = vld [vmem:[%s177 + $0x60] sm:$0xf]
      %v229 = vld [vmem:[%s177 + $0x64] sm:$0xf]
      %v230 = vld [vmem:[%s177 + $0x68] sm:$0xf]
      %v231 = vld [vmem:[%s177 + $0x6c] sm:$0xf]
      %v232 = vld [vmem:[%s177 + $0x70] sm:$0xf]
      %v233 = vld [vmem:[%s177 + $0x74] sm:$0xf]
      %v234 = vld [vmem:[%s177 + $0x78] sm:$0xf]
      %v235 = vld [vmem:[%s177 + $0x7c] sm:$0xf]
      %v236 = vld [vmem:[%s177 + $0x80] sm:$0xf]
      %v237 = vld [vmem:[%s177 + $0x84] sm:$0xf]
      %v238 = vld [vmem:[%s177 + $0x88] sm:$0xf]
      %v239 = vld [vmem:[%s177 + $0x8c] sm:$0xf]
      %v240 = vld [vmem:[%s177 + $0x90] sm:$0xf]
      %v241 = vld [vmem:[%s177 + $0x94] sm:$0xf]
      %v242 = vld [vmem:[%s177 + $0x98] sm:$0xf]
      %v243 = vld [vmem:[%s177 + $0x9c] sm:$0xf]
      %v244 = vld [vmem:[%s177 + $0xa0] sm:$0xf]
      %v245 = vld [vmem:[%s177 + $0xa4] sm:$0xf]
      %v246 = vld [vmem:[%s177 + $0xa8] sm:$0xf]
      %v247 = vld [vmem:[%s177 + $0xac] sm:$0xf]
      %v248 = vld [vmem:[%s177 + $0xb0] sm:$0xf]
      %v249 = vld [vmem:[%s177 + $0xb4] sm:$0xf]
      %v250 = vld [vmem:[%s177 + $0xb8] sm:$0xf]
      %v251 = vld [vmem:[%s177 + $0xbc] sm:$0xf]
      %v252 = vld [vmem:[%s177 + $0xc0] sm:$0xf]
      %v253 = vld [vmem:[%s177 + $0xc4] sm:$0xf]
      %v254 = vld [vmem:[%s177 + $0xc8] sm:$0xf]
      %v255 = vld [vmem:[%s177 + $0xcc] sm:$0xf]
      %v256 = vld [vmem:[%s177 + $0xd0] sm:$0xf]
      %v257 = vld [vmem:[%s177 + $0xd4] sm:$0xf]
      %v258 = vld [vmem:[%s177 + $0xd8] sm:$0xf]
      %v259 = vld [vmem:[%s177 + $0xdc] sm:$0xf]
      %v260 = vld [vmem:[%s177 + $0xe0] sm:$0xf]
      %v261 = vld [vmem:[%s177 + $0xe4] sm:$0xf]
      %v262 = vld [vmem:[%s177 + $0xe8] sm:$0xf]
      %v263 = vld [vmem:[%s177 + $0xec] sm:$0xf]
      %v264 = vld [vmem:[%s177 + $0xf0] sm:$0xf]
      %v265 = vld [vmem:[%s177 + $0xf4] sm:$0xf]
      %v266 = vld [vmem:[%s177 + $0xf8] sm:$0xf]
      %v267 = vld [vmem:[%s177 + $0xfc] sm:$0xf]
      %v284 = vunpack.c.l.b16 %v188
      %v285 = vunpack.c.h.b16 %v188
      %v286 = vunpack.c.l.b16 %v189
      %v287 = vunpack.c.h.b16 %v189
      %v288 = vunpack.c.l.b16 %v190
      %v289 = vunpack.c.h.b16 %v190
      %v290 = vunpack.c.l.b16 %v191
      %v291 = vunpack.c.h.b16 %v191
      %v292 = vunpack.c.l.b16 %v192
      %v293 = vunpack.c.h.b16 %v192
      %v294 = vunpack.c.l.b16 %v193
      %v295 = vunpack.c.h.b16 %v193
      %v296 = vunpack.c.l.b16 %v194
      %v297 = vunpack.c.h.b16 %v194
      %v298 = vunpack.c.l.b16 %v195
      %v299 = vunpack.c.h.b16 %v195
      %v300 = vunpack.c.l.b16 %v196
      %v301 = vunpack.c.h.b16 %v196
      %v302 = vunpack.c.l.b16 %v197
      %v303 = vunpack.c.h.b16 %v197
      %v304 = vunpack.c.l.b16 %v198
      %v305 = vunpack.c.h.b16 %v198
      %v306 = vunpack.c.l.b16 %v199
      %v307 = vunpack.c.h.b16 %v199
      %v308 = vunpack.c.l.b16 %v200
      %v309 = vunpack.c.h.b16 %v200
      %v310 = vunpack.c.l.b16 %v201
      %v311 = vunpack.c.h.b16 %v201
      %v312 = vunpack.c.l.b16 %v202
      %v313 = vunpack.c.h.b16 %v202
      %v314 = vunpack.c.l.b16 %v203
      %v315 = vunpack.c.h.b16 %v203
      %v316 = vpack.c.b16 %v288, %v284
      %v317 = vpack.c.b16 %v289, %v285
      %v318 = vpack.c.b16 %v290, %v286
      %v319 = vpack.c.b16 %v291, %v287
      %v320 = vpack.c.b16 %v296, %v292
      %v321 = vpack.c.b16 %v297, %v293
      %v322 = vpack.c.b16 %v298, %v294
      %v323 = vpack.c.b16 %v299, %v295
      %v324 = vpack.c.b16 %v304, %v300
      %v325 = vpack.c.b16 %v305, %v301
      %v326 = vpack.c.b16 %v306, %v302
      %v327 = vpack.c.b16 %v307, %v303
      %v328 = vpack.c.b16 %v312, %v308
      %v329 = vpack.c.b16 %v313, %v309
      %v330 = vpack.c.b16 %v314, %v310
      %v331 = vpack.c.b16 %v315, %v311
      %v412 = vunpack.c.l.b16 %v204
      %v413 = vunpack.c.l.b16 %v205
      %v414 = vunpack.c.l.b16 %v206
      %v415 = vunpack.c.l.b16 %v207
      %v416 = vunpack.c.l.b16 %v208
      %v417 = vunpack.c.l.b16 %v209
      %v418 = vunpack.c.l.b16 %v210
      %v419 = vunpack.c.l.b16 %v211
      %v420 = vunpack.c.l.b16 %v212
      %v421 = vunpack.c.l.b16 %v213
      %v422 = vunpack.c.l.b16 %v214
      %v423 = vunpack.c.l.b16 %v215
      %v424 = vunpack.c.l.b16 %v216
      %v425 = vunpack.c.l.b16 %v217
      %v426 = vunpack.c.l.b16 %v218
      %v427 = vunpack.c.l.b16 %v219
      %v428 = vunpack.c.l.b16 %v220
      %v429 = vunpack.c.l.b16 %v221
      %v430 = vunpack.c.l.b16 %v222
      %v431 = vunpack.c.l.b16 %v223
      %v432 = vunpack.c.l.b16 %v224
      %v433 = vunpack.c.l.b16 %v225
      %v434 = vunpack.c.l.b16 %v226
      %v435 = vunpack.c.l.b16 %v227
      %v436 = vunpack.c.l.b16 %v228
      %v437 = vunpack.c.l.b16 %v229
      %v438 = vunpack.c.l.b16 %v230
      %v439 = vunpack.c.l.b16 %v231
      %v440 = vunpack.c.l.b16 %v232
      %v441 = vunpack.c.l.b16 %v233
      %v442 = vunpack.c.l.b16 %v234
      %v443 = vunpack.c.l.b16 %v235
      %v444 = vunpack.c.l.b16 %v236
      %v445 = vunpack.c.l.b16 %v237
      %v446 = vunpack.c.l.b16 %v238
      %v447 = vunpack.c.l.b16 %v239
      %v448 = vunpack.c.l.b16 %v240
      %v449 = vunpack.c.l.b16 %v241
      %v450 = vunpack.c.l.b16 %v242
      %v451 = vunpack.c.l.b16 %v243
      %v452 = vunpack.c.l.b16 %v244
      %v453 = vunpack.c.l.b16 %v245
      %v454 = vunpack.c.l.b16 %v246
      %v455 = vunpack.c.l.b16 %v247
      %v456 = vunpack.c.l.b16 %v248
      %v457 = vunpack.c.l.b16 %v249
      %v458 = vunpack.c.l.b16 %v250
      %v459 = vunpack.c.l.b16 %v251
      %v460 = vunpack.c.l.b16 %v252
      %v461 = vunpack.c.l.b16 %v253
      %v462 = vunpack.c.l.b16 %v254
      %v463 = vunpack.c.l.b16 %v255
      %v464 = vunpack.c.l.b16 %v256
      %v465 = vunpack.c.l.b16 %v257
      %v466 = vunpack.c.l.b16 %v258
      %v467 = vunpack.c.l.b16 %v259
      %v468 = vunpack.c.l.b16 %v260
      %v469 = vunpack.c.l.b16 %v261
      %v470 = vunpack.c.l.b16 %v262
      %v471 = vunpack.c.l.b16 %v263
      %v472 = vunpack.c.l.b16 %v264
      %v473 = vunpack.c.l.b16 %v265
      %v474 = vunpack.c.l.b16 %v266
      %v475 = vunpack.c.l.b16 %v267
      %v476 = vpack.c.b16 %v413, %v412
      %v477 = vpack.c.b16 %v415, %v414
      %v478 = vpack.c.b16 %v417, %v416
      %v479 = vpack.c.b16 %v419, %v418
      %v480 = vpack.c.b16 %v421, %v420
      %v481 = vpack.c.b16 %v423, %v422
      %v482 = vpack.c.b16 %v425, %v424
      %v483 = vpack.c.b16 %v427, %v426
      %v484 = vpack.c.b16 %v429, %v428
      %v485 = vpack.c.b16 %v431, %v430
      %v486 = vpack.c.b16 %v433, %v432
      %v487 = vpack.c.b16 %v435, %v434
      %v488 = vpack.c.b16 %v437, %v436
      %v489 = vpack.c.b16 %v439, %v438
      %v490 = vpack.c.b16 %v441, %v440
      %v491 = vpack.c.b16 %v443, %v442
      %v492 = vpack.c.b16 %v445, %v444
      %v493 = vpack.c.b16 %v447, %v446
      %v494 = vpack.c.b16 %v449, %v448
      %v495 = vpack.c.b16 %v451, %v450
      %v496 = vpack.c.b16 %v453, %v452
      %v497 = vpack.c.b16 %v455, %v454
      %v498 = vpack.c.b16 %v457, %v456
      %v499 = vpack.c.b16 %v459, %v458
      %v500 = vpack.c.b16 %v461, %v460
      %v501 = vpack.c.b16 %v463, %v462
      %v502 = vpack.c.b16 %v465, %v464
      %v503 = vpack.c.b16 %v467, %v466
      %v504 = vpack.c.b16 %v469, %v468
      %v505 = vpack.c.b16 %v471, %v470
      %v506 = vpack.c.b16 %v473, %v472
      %v507 = vpack.c.b16 %v475, %v474
      %540 = vmatprep.subr.bf16.mxu0 0
      %541 = vmatpush1.bf16.msra.mxu0 %v476
      %542 = vmatprep.subr.bf16.mxu0 0
      %543 = vmatpush1.bf16.msra.mxu0 %v477
      %544 = vmatprep.subr.bf16.mxu0 0
      %545 = vmatpush1.bf16.msra.mxu0 %v478
      %546 = vmatprep.subr.bf16.mxu0 0
      %547 = vmatpush1.bf16.msra.mxu0 %v479
      %548 = vmatprep.subr.bf16.mxu0 0
      %549 = vmatpush1.bf16.msra.mxu0 %v480
      %550 = vmatprep.subr.bf16.mxu0 0
      %551 = vmatpush1.bf16.msra.mxu0 %v481
      %552 = vmatprep.subr.bf16.mxu0 0
      %553 = vmatpush1.bf16.msra.mxu0 %v482
      %554 = vmatprep.subr.bf16.mxu0 0
      %555 = vmatpush1.bf16.msra.mxu0 %v483
      %556 = vmatprep.subr.bf16.mxu0 0
      %557 = vmatpush1.bf16.msra.mxu0 %v484
      %558 = vmatprep.subr.bf16.mxu0 0
      %559 = vmatpush1.bf16.msra.mxu0 %v485
      %560 = vmatprep.subr.bf16.mxu0 0
      %561 = vmatpush1.bf16.msra.mxu0 %v486
      %562 = vmatprep.subr.bf16.mxu0 0
      %563 = vmatpush1.bf16.msra.mxu0 %v487
      %564 = vmatprep.subr.bf16.mxu0 0
      %565 = vmatpush1.bf16.msra.mxu0 %v488
      %566 = vmatprep.subr.bf16.mxu0 0
      %567 = vmatpush1.bf16.msra.mxu0 %v489
      %568 = vmatprep.subr.bf16.mxu0 0
      %569 = vmatpush1.bf16.msra.mxu0 %v490
      %570 = vmatprep.subr.bf16.mxu0 0
      %571 = vmatpush1.bf16.msra.mxu0 %v491
      %572 = vmatprep.mubr.bf16.mxu0 %v317
      %573 = vmatmul.mubr.bf16.gmra.mrb[0].mxu0 %v316
      %v574 = vpop.f32.mrb[0].mxu0
      %v575 = vadd.f32 0.0, %v574
      %v576 = vpop.f32.mrb[0].mxu0
      %v577 = vpop.f32.mrb[0].mxu0
      %v578 = vadd.f32 0.0, %v577
      %v579 = vpop.f32.mrb[0].mxu0
      %580 = vmatprep.mubr.bf16.mxu0 %v321
      %581 = vmatmul.mubr.bf16.gmra.mrb[0].mxu0 %v320
      %v582 = vpop.f32.mrb[0].mxu0
      %v583 = vadd.f32 0.0, %v582
      %v584 = vpop.f32.mrb[0].mxu0
      %v585 = vpop.f32.mrb[0].mxu0
      %v586 = vadd.f32 0.0, %v585
      %v587 = vpop.f32.mrb[0].mxu0
      %588 = vmatprep.mubr.bf16.mxu0 %v325
      %589 = vmatmul.mubr.bf16.gmra.mrb[0].mxu0 %v324
      %v590 = vpop.f32.mrb[0].mxu0
      %v591 = vadd.f32 0.0, %v590
      %v592 = vpop.f32.mrb[0].mxu0
      %v593 = vpop.f32.mrb[0].mxu0
      %v594 = vadd.f32 0.0, %v593
      %v595 = vpop.f32.mrb[0].mxu0
      %596 = vmatprep.mubr.bf16.mxu0 %v329
      %597 = vmatmul.mubr.bf16.gmra.mrb[0].mxu0 %v328
      %v598 = vpop.f32.mrb[0].mxu0
      %v599 = vadd.f32 0.0, %v598
      %v600 = vpop.f32.mrb[0].mxu0
      %v601 = vpop.f32.mrb[0].mxu0
      %v602 = vadd.f32 0.0, %v601
      %v603 = vpop.f32.mrb[0].mxu0
      %604 = vdwg.mxu0
      %605 = vmatprep.subr.bf16.mxu0 0
      %606 = vmatpush1.bf16.msra.mxu0 %v492
      %607 = vmatprep.subr.bf16.mxu0 0
      %608 = vmatpush1.bf16.msra.mxu0 %v493
      %609 = vmatprep.subr.bf16.mxu0 0
      %610 = vmatpush1.bf16.msra.mxu0 %v494
      %611 = vmatprep.subr.bf16.mxu0 0
      %612 = vmatpush1.bf16.msra.mxu0 %v495
      %613 = vmatprep.subr.bf16.mxu0 0
      %614 = vmatpush1.bf16.msra.mxu0 %v496
      %615 = vmatprep.subr.bf16.mxu0 0
      %616 = vmatpush1.bf16.msra.mxu0 %v497
      %617 = vmatprep.subr.bf16.mxu0 0
      %618 = vmatpush1.bf16.msra.mxu0 %v498
      %619 = vmatprep.subr.bf16.mxu0 0
      %620 = vmatpush1.bf16.msra.mxu0 %v499
      %621 = vmatprep.subr.bf16.mxu0 0
      %622 = vmatpush1.bf16.msra.mxu0 %v500
      %623 = vmatprep.subr.bf16.mxu0 0
      %624 = vmatpush1.bf16.msra.mxu0 %v501
      %625 = vmatprep.subr.bf16.mxu0 0
      %626 = vmatpush1.bf16.msra.mxu0 %v502
      %627 = vmatprep.subr.bf16.mxu0 0
      %628 = vmatpush1.bf16.msra.mxu0 %v503
      %629 = vmatprep.subr.bf16.mxu0 0
      %630 = vmatpush1.bf16.msra.mxu0 %v504
      %631 = vmatprep.subr.bf16.mxu0 0
      %632 = vmatpush1.bf16.msra.mxu0 %v505
      %633 = vmatprep.subr.bf16.mxu0 0
      %634 = vmatpush1.bf16.msra.mxu0 %v506
      %635 = vmatprep.subr.bf16.mxu0 0
      %636 = vmatpush1.bf16.msra.mxu0 %v507
      %637 = vmatprep.mubr.bf16.mxu0 %v319
      %638 = vmatmul.mubr.bf16.gmra.mrb[0].mxu0 %v318
      %v639 = vpop.f32.mrb[0].mxu0
      %v640 = vadd.f32 %v575, %v639
      %v641 = vpop.f32.mrb[0].mxu0
      %v642 = vpop.f32.mrb[0].mxu0
      %v643 = vadd.f32 %v578, %v642
      %v644 = vpop.f32.mrb[0].mxu0
      %645 = vmatprep.mubr.bf16.mxu0 %v323
      %646 = vmatmul.mubr.bf16.gmra.mrb[0].mxu0 %v322
      %v647 = vpop.f32.mrb[0].mxu0
      %v648 = vadd.f32 %v583, %v647
      %v649 = vpop.f32.mrb[0].mxu0
      %v650 = vpop.f32.mrb[0].mxu0
      %v651 = vadd.f32 %v586, %v650
      %v652 = vpop.f32.mrb[0].mxu0
      %653 = vmatprep.mubr.bf16.mxu0 %v327
      %654 = vmatmul.mubr.bf16.gmra.mrb[0].mxu0 %v326
      %v655 = vpop.f32.mrb[0].mxu0
      %v656 = vadd.f32 %v591, %v655
      %v657 = vpop.f32.mrb[0].mxu0
      %v658 = vpop.f32.mrb[0].mxu0
      %v659 = vadd.f32 %v594, %v658
      %v660 = vpop.f32.mrb[0].mxu0
      %661 = vmatprep.mubr.bf16.mxu0 %v331
      %662 = vmatmul.mubr.bf16.gmra.mrb[0].mxu0 %v330
      %v663 = vpop.f32.mrb[0].mxu0
      %v664 = vadd.f32 %v599, %v663
      %v665 = vpop.f32.mrb[0].mxu0
      %v666 = vpop.f32.mrb[0].mxu0
      %v667 = vadd.f32 %v602, %v666
      %v668 = vpop.f32.mrb[0].mxu0
      %669 = vdwg.mxu0
      %670 = vst [vmem:[%s185] sm:$0xff] %v640
      %671 = vst [vmem:[%s185 + $0x8] sm:$0xff] %v643
      %672 = vst [vmem:[%s185 + $0x10] sm:$0xff] %v648
      %673 = vst [vmem:[%s185 + $0x18] sm:$0xff] %v651
      %674 = vst [vmem:[%s185 + $0x20] sm:$0xff] %v656
      %675 = vst [vmem:[%s185 + $0x28] sm:$0xff] %v659
      %676 = vst [vmem:[%s185 + $0x30] sm:$0xff] %v664
      %677 = vst [vmem:[%s185 + $0x38] sm:$0xff] %v667
      %s678 = smul.u32 8, %s17
      %p679 = scmp.lt.s32.totalorder %s678, 15
      %s680 = scalar_select %p679, %s678, 15
      %p681 = scmp.lt.s32.totalorder %s18, 0
      %s682 = scalar_select %p681, %s18, 0
      %s683 = sadd.s32 %s682, %s680
      %s684 = smul.addr %s683, 8
      %s685 = scalar_lea.vmem %s2, %s684
      // Predicated region
      $region29: #{cifar_hash_convnet_forward.4} parent=27 // pred_check
        %p686 = pneg %p97
      $region30: #{cifar_hash_convnet_forward.4} parent=27 // pred_check_branch
        %688 = sbr.rel (%p686) target = $region32
      $region31: #{cifar_hash_convnet_forward.4} parent=27 // pred_region
        %s689 = smul.u32 8, %s17
      $region32: #{cifar_hash_convnet_forward.4} parent=27 // pred_fallthru
        _
    $region28: #{cifar_hash_convnet_forward.4} parent=5 // pred_fallthru
      _
    %p690 = scmp.le.s32.totalorder 2, %s8
    // Predicated region
    $region33: #{cifar_hash_convnet_forward.4} parent=5 // pred_check
      %p691 = pneg %p690
    $region34: #{cifar_hash_convnet_forward.4} parent=5 // pred_check_branch
      %693 = sbr.rel (%p691) target = $region36
    $region35: #{cifar_hash_convnet_forward.4} parent=5 // pred_region
      %s694 = ssub.s32 %s8, 2
      // Predicated region
      $region37: #{cifar_hash_convnet_forward.4} parent=35 // pred_check
        %p695 = pneg %p103
      $region38: #{cifar_hash_convnet_forward.4} parent=35 // pred_check_branch
        %697 = sbr.rel (%p695) target = $region40
      $region39: #{cifar_hash_convnet_forward.4} parent=35 // pred_region
        %s698 = smul.u32 8, %s19
        %p699 = scmp.lt.s32.totalorder %s698, 15
        %s700 = scalar_select %p699, %s698, 15
        %p701 = scmp.lt.s32.totalorder %s20, 0
        %s702 = scalar_select %p701, %s20, 0
        %s703 = sadd.s32 %s702, %s700
        %s704 = smul.addr %s703, 8
        %s705 = scalar_lea.vmem %s2, %s704
      $region40: #{cifar_hash_convnet_forward.4} parent=35 // pred_fallthru
        _
    $region36: #{cifar_hash_convnet_forward.4} parent=5 // pred_fallthru
      _
  $region6: #{cifar_hash_convnet_forward.4} parent=0 // loop_footer
    %s12 = sadd.s32 1, %s8
  $region7: #{cifar_hash_convnet_forward.4} parent=0 // loop_footer_branch
    %7 = sbr.rel target = $region3
  $region8: #{cifar_hash_convnet_forward.4} parent=0 // loop_exit
    _

// kernel: cifar_hash_convnet_forward.5
$region0: #{cifar_hash_convnet_forward.5}
  #allocation0 [shape = 'u32[]', space=smem, size = 0x4, offset = 0x4, fixed_abs, tag = 'smem constant byte address 0x4 - core index']
  #allocation1 [shape = 'u32[144,128]{1,0:T(1,128)}', space=vmem, size = 0x12000, scoped, tag = 'internal scratch']
  %s0 = inlined_call_operand.vmem [shape: f32[128,128], index: 0, kind: input, shape index: {}]
  %s1 = inlined_call_operand.vmem [shape: bf16[128,512], index: 1, kind: input, shape index: {}]
  %s2 = inlined_call_operand.vmem [shape: bf16[512,128], index: 2, kind: input, shape index: {}]
  %s3 = inlined_call_operand.vmem [shape: f32[2,8,128], index: 3, kind: output, shape index: {}]
  %s4 = sld [smem:[#allocation0]]
  $region45: #{cifar_hash_convnet_forward.5} parent=0
    _
  %s6 = ssub.s32 1, %s4
  %s7 = scalar_select 0, %s6, %s4
  loop: start=0, step=1, limit=4
  $region2: #{cifar_hash_convnet_forward.5} parent=0 // loop_pre_header
    _
  $region3: #{cifar_hash_convnet_forward.5} parent=0 // loop_header
    %s9 = sphi 0, %s13
    %p10 = scmp.ge.s32.totalorder %s9, 4
    %s19 = sphi 0, %s21
    %s22 = sphi 0, %s19
    %s23 = sphi 0, %s22
    %s39 = sphi 0, %s23
    %s43 = sphi 0, %s43
    %s45 = sphi 0, %s43
    %s46 = sphi 0, %s45
    %s60 = sphi 0, %s46
    %s64 = sphi 0, %s64
    %s66 = sphi 0, %s64
    %s67 = sphi 0, %s66
    %s81 = sphi 0, %s67
    %s87 = sphi 0, %s89
    %s90 = sphi 0, %s87
    %s91 = sphi 0, %s90
    %s107 = sphi 0, %s91
  $region4: #{cifar_hash_convnet_forward.5} parent=0 // loop_header_branch
    %12 = sbr.rel (%p10) target = $region8
  $region5: #{cifar_hash_convnet_forward.5} parent=0 // loop_body
    %s14 = ssub.s32 %s9, 1
    %s15 = ssub.s32 %s9, 2
    %s16 = sadd.s32 %s9, 1
    %s17 = ssub.s32 %s9, %s16
    %p18 = scmp.eq.s32.totalorder %s17, 0
    %s20 = sadd.s32 %s19, 1
    %s21 = scalar_select %p18, %s19, %s20
    %p24 = pneg %p18
    %p25 = scmp.eq.s32.totalorder %s9, 1
    %p26 = por %p24, %p25
    %p27 = scmp.ne.s32.totalorder %s19, %s22
    %p28 = scmp.eq.s32.totalorder %s9, 0
    %p29 = por %p27, %p28
    %p30 = scmp.ne.s32.totalorder %s19, %s22
    %p31 = scmp.eq.s32.totalorder %s14, 1
    %p32 = por %p30, %p31
    %p33 = scmp.ne.s32.totalorder %s22, %s23
    %p34 = scmp.eq.s32.totalorder %s14, 0
    %p35 = por %p33, %p34
    %p36 = scmp.ne.s32.totalorder %s22, %s23
    %p37 = scmp.eq.s32.totalorder %s15, 1
    %p38 = por %p36, %p37
    %p40 = scmp.ne.s32.totalorder %s23, %s39
    %p41 = scmp.eq.s32.totalorder %s15, 0
    %p42 = por %p40, %p41
    %s44 = sadd.s32 %s43, 1
    %p47 = scmp.eq.s32.totalorder %s9, 1
    %p48 = scmp.ne.s32.totalorder %s43, %s45
    %p49 = scmp.eq.s32.totalorder %s9, 0
    %p50 = por %p48, %p49
    %p51 = scmp.ne.s32.totalorder %s43, %s45
    %p52 = scmp.eq.s32.totalorder %s14, 1
    %p53 = por %p51, %p52
    %p54 = scmp.ne.s32.totalorder %s45, %s46
    %p55 = scmp.eq.s32.totalorder %s14, 0
    %p56 = por %p54, %p55
    %p57 = scmp.ne.s32.totalorder %s45, %s46
    %p58 = scmp.eq.s32.totalorder %s15, 1
    %p59 = por %p57, %p58
    %p61 = scmp.ne.s32.totalorder %s46, %s60
    %p62 = scmp.eq.s32.totalorder %s15, 0
    %p63 = por %p61, %p62
    %s65 = sadd.s32 %s64, 1
    %p68 = scmp.eq.s32.totalorder %s9, 1
    %p69 = scmp.ne.s32.totalorder %s64, %s66
    %p70 = scmp.eq.s32.totalorder %s9, 0
    %p71 = por %p69, %p70
    %p72 = scmp.ne.s32.totalorder %s64, %s66
    %p73 = scmp.eq.s32.totalorder %s14, 1
    %p74 = por %p72, %p73
    %p75 = scmp.ne.s32.totalorder %s66, %s67
    %p76 = scmp.eq.s32.totalorder %s14, 0
    %p77 = por %p75, %p76
    %p78 = scmp.ne.s32.totalorder %s66, %s67
    %p79 = scmp.eq.s32.totalorder %s15, 1
    %p80 = por %p78, %p79
    %p82 = scmp.ne.s32.totalorder %s67, %s81
    %p83 = scmp.eq.s32.totalorder %s15, 0
    %p84 = por %p82, %p83
    %s85 = ssub.s32 %s9, %s16
    %p86 = scmp.eq.s32.totalorder %s85, 0
    %s88 = sadd.s32 %s87, 1
    %s89 = scalar_select %p86, %s87, %s88
    %p92 = pneg %p86
    %p93 = scmp.eq.s32.totalorder %s9, 1
    %p94 = por %p92, %p93
    %p95 = scmp.ne.s32.totalorder %s87, %s90
    %p96 = scmp.eq.s32.totalorder %s9, 0
    %p97 = por %p95, %p96
    %p98 = scmp.ne.s32.totalorder %s87, %s90
    %p99 = scmp.eq.s32.totalorder %s14, 1
    %p100 = por %p98, %p99
    %p101 = scmp.ne.s32.totalorder %s90, %s91
    %p102 = scmp.eq.s32.totalorder %s14, 0
    %p103 = por %p101, %p102
    %p104 = scmp.ne.s32.totalorder %s90, %s91
    %p105 = scmp.eq.s32.totalorder %s15, 1
    %p106 = por %p104, %p105
    %p108 = scmp.ne.s32.totalorder %s91, %s107
    %p109 = scmp.eq.s32.totalorder %s15, 0
    %p110 = por %p108, %p109
    %p111 = scmp.le.s32.totalorder 1, %s9
    %p112 = scmp.lt.s32.totalorder %s9, 3
    %p113 = pnand %p111, %p112
    %p114 = pneg %p113
    // Predicated region
    $region9: #{cifar_hash_convnet_forward.5} parent=5 // pred_check
      _
    $region10: #{cifar_hash_convnet_forward.5} parent=5 // pred_check_branch
      %116 = sbr.rel (%p113) target = $region12
    $region11: #{cifar_hash_convnet_forward.5} parent=5 // pred_region
      %s117 = ssub.s32 %s9, 1
      // Predicated region
      $region13: #{cifar_hash_convnet_forward.5} parent=11 // pred_check
        %p118 = pneg %p56
      $region14: #{cifar_hash_convnet_forward.5} parent=11 // pred_check_branch
        %120 = sbr.rel (%p118) target = $region16
      $region15: #{cifar_hash_convnet_forward.5} parent=11 // pred_region
        _
      $region16: #{cifar_hash_convnet_forward.5} parent=11 // pred_fallthru
        _
      // Predicated region
      $region17: #{cifar_hash_convnet_forward.5} parent=11 // pred_check
        %p121 = pneg %p77
      $region18: #{cifar_hash_convnet_forward.5} parent=11 // pred_check_branch
        %123 = sbr.rel (%p121) target = $region20
      $region19: #{cifar_hash_convnet_forward.5} parent=11 // pred_region
        _
      $region20: #{cifar_hash_convnet_forward.5} parent=11 // pred_fallthru
        _
    $region12: #{cifar_hash_convnet_forward.5} parent=5 // pred_fallthru
      _
    %p124 = scmp.lt.s32.totalorder %s9, 2
    // Predicated region
    $region21: #{cifar_hash_convnet_forward.5} parent=5 // pred_check
      %p125 = pneg %p124
    $region22: #{cifar_hash_convnet_forward.5} parent=5 // pred_check_branch
      %127 = sbr.rel (%p125) target = $region24
    $region23: #{cifar_hash_convnet_forward.5} parent=5 // pred_region
      // Predicated region
      $region25: #{cifar_hash_convnet_forward.5} parent=23 // pred_check
        %p128 = pneg %p29
      $region26: #{cifar_hash_convnet_forward.5} parent=23 // pred_check_branch
        %130 = sbr.rel (%p128) target = $region28
      $region27: #{cifar_hash_convnet_forward.5} parent=23 // pred_region
        %s131 = smul.u32 8, %s9
        %p132 = scmp.lt.s32.totalorder %s131, 15
        %s133 = scalar_select %p132, %s131, 15
        %s134 = smul.addr %s133, 8
        %s135 = scalar_lea.vmem %s0, %s134
        %s136 = smul.u32 8, %s9
      $region28: #{cifar_hash_convnet_forward.5} parent=23 // pred_fallthru
        _
    $region24: #{cifar_hash_convnet_forward.5} parent=5 // pred_fallthru
      _
    %p137 = scmp.le.s32.totalorder 1, %s9
    %p138 = scmp.lt.s32.totalorder %s9, 3
    %p139 = pnand %p137, %p138
    %p140 = pneg %p139
    // Predicated region
    $region29: #{cifar_hash_convnet_forward.5} parent=5 // pred_check
      _
    $region30: #{cifar_hash_convnet_forward.5} parent=5 // pred_check_branch
      %142 = sbr.rel (%p139) target = $region32
    $region31: #{cifar_hash_convnet_forward.5} parent=5 // pred_region
      %s143 = ssub.s32 %s9, 1
      %s144 = smul.u32 8, %s14
      %p145 = scmp.lt.s32.totalorder %s144, 15
      %s146 = scalar_select %p145, %s144, 15
      %s147 = smul.addr %s146, 8
      %s148 = scalar_lea.vmem %s0, %s147
      %p149 = pneg %p35
      %p150 = pneg %p32
      %p151 = pneg %p56
      %p152 = pneg %p53
      %p153 = pneg %p77
      %p154 = pneg %p74
      %p155 = pneg %p103
      %p156 = pneg %p100
      %p157 = scmp.lt.s32.totalorder %s14, 1
      %s158 = scalar_select %p157, %s14, 1
      %s159 = smul.addr %s158, 8
      %s160 = scalar_lea.vmem %s3, %s159
      %s161 = smul.u32 8, %s14
      %p162 = scmp.lt.s32.totalorder %s161, 15
      %s163 = scalar_select %p162, %s161, 15
      %s164 = smul.addr %s163, 8
      %s165 = scalar_lea.vmem %s0, %s164
      %s166 = smul.u32 8, %s14
      %p167 = scmp.lt.s32.totalorder %s14, 1
      %s168 = scalar_select %p167, %s14, 1
      %s169 = smul.addr %s168, 8
      %s170 = scalar_lea.vmem %s3, %s169
      %v172 = vld [vmem:[%s165] sm:$0xff]
      %v173 = vld [vmem:[%s165 + $0x8] sm:$0xff]
      %v174 = vld [vmem:[%s165 + $0x10] sm:$0xff]
      %v175 = vld [vmem:[%s165 + $0x18] sm:$0xff]
      %v176 = vld [vmem:[%s165 + $0x20] sm:$0xff]
      %v177 = vld [vmem:[%s165 + $0x28] sm:$0xff]
      %v178 = vld [vmem:[%s165 + $0x30] sm:$0xff]
      %v179 = vld [vmem:[%s165 + $0x38] sm:$0xff]
      %v180 = vmax.f32 %v172, 0.0
      %v181 = vmax.f32 %v173, 0.0
      %v182 = vmax.f32 %v174, 0.0
      %v183 = vmax.f32 %v175, 0.0
      %v184 = vmax.f32 %v176, 0.0
      %v185 = vmax.f32 %v177, 0.0
      %v186 = vmax.f32 %v178, 0.0
      %v187 = vmax.f32 %v179, 0.0
      %v188 = vadd.f32 %v180, %v181
      %v189 = vadd.f32 %v188, %v182
      %v190 = vadd.f32 %v189, %v183
      %v191 = vadd.f32 %v190, %v184
      %v192 = vadd.f32 %v191, %v185
      %v193 = vadd.f32 %v192, %v186
      %v194 = vadd.f32 %v193, %v187
      %v195 = vrot.slane %v194, 4
      %v196 = vadd.f32 %v194, %v195
      %v197 = vrot.slane %v196, 2
      %v198 = vadd.f32 %v196, %v197
      %v199 = vrot.slane %v198, 1
      %v200 = vadd.f32 %v198, %v199
      %v201 = vrcp.pop 64.0
      %v202 = vmul.f32 %v200, %v201
      %v203 = vpack.c.bf16 %v202, %v202
      %v204 = vld [vmem:[%s1] sm:$0xff]
      %v205 = vld [vmem:[%s1 + $0x8] sm:$0xff]
      %v206 = vld [vmem:[%s1 + $0x10] sm:$0xff]
      %v207 = vld [vmem:[%s1 + $0x18] sm:$0xff]
      %v208 = vld [vmem:[%s1 + $0x20] sm:$0xff]
      %v209 = vld [vmem:[%s1 + $0x28] sm:$0xff]
      %v210 = vld [vmem:[%s1 + $0x30] sm:$0xff]
      %v211 = vld [vmem:[%s1 + $0x38] sm:$0xff]
      %v212 = vld [vmem:[%s1 + $0x40] sm:$0xff]
      %v213 = vld [vmem:[%s1 + $0x48] sm:$0xff]
      %v214 = vld [vmem:[%s1 + $0x50] sm:$0xff]
      %v215 = vld [vmem:[%s1 + $0x58] sm:$0xff]
      %v216 = vld [vmem:[%s1 + $0x60] sm:$0xff]
      %v217 = vld [vmem:[%s1 + $0x68] sm:$0xff]
      %v218 = vld [vmem:[%s1 + $0x70] sm:$0xff]
      %v219 = vld [vmem:[%s1 + $0x78] sm:$0xff]
      %v220 = vld [vmem:[%s1 + $0x80] sm:$0xff]
      %v221 = vld [vmem:[%s1 + $0x88] sm:$0xff]
      %v222 = vld [vmem:[%s1 + $0x90] sm:$0xff]
      %v223 = vld [vmem:[%s1 + $0x98] sm:$0xff]
      %v224 = vld [vmem:[%s1 + $0xa0] sm:$0xff]
      %v225 = vld [vmem:[%s1 + $0xa8] sm:$0xff]
      %v226 = vld [vmem:[%s1 + $0xb0] sm:$0xff]
      %v227 = vld [vmem:[%s1 + $0xb8] sm:$0xff]
      %v228 = vld [vmem:[%s1 + $0xc0] sm:$0xff]
      %v229 = vld [vmem:[%s1 + $0xc8] sm:$0xff]
      %v230 = vld [vmem:[%s1 + $0xd0] sm:$0xff]
      %v231 = vld [vmem:[%s1 + $0xd8] sm:$0xff]
      %v232 = vld [vmem:[%s1 + $0xe0] sm:$0xff]
      %v233 = vld [vmem:[%s1 + $0xe8] sm:$0xff]
      %v234 = vld [vmem:[%s1 + $0xf0] sm:$0xff]
      %v235 = vld [vmem:[%s1 + $0xf8] sm:$0xff]
      %v268 = vunpack.c.l.b16 %v204
      %v269 = vunpack.c.h.b16 %v204
      %v270 = vunpack.c.l.b16 %v205
      %v271 = vunpack.c.h.b16 %v205
      %v272 = vunpack.c.l.b16 %v206
      %v273 = vunpack.c.h.b16 %v206
      %v274 = vunpack.c.l.b16 %v207
      %v275 = vunpack.c.h.b16 %v207
      %v276 = vunpack.c.l.b16 %v208
      %v277 = vunpack.c.h.b16 %v208
      %v278 = vunpack.c.l.b16 %v209
      %v279 = vunpack.c.h.b16 %v209
      %v280 = vunpack.c.l.b16 %v210
      %v281 = vunpack.c.h.b16 %v210
      %v282 = vunpack.c.l.b16 %v211
      %v283 = vunpack.c.h.b16 %v211
      %v284 = vunpack.c.l.b16 %v212
      %v285 = vunpack.c.h.b16 %v212
      %v286 = vunpack.c.l.b16 %v213
      %v287 = vunpack.c.h.b16 %v213
      %v288 = vunpack.c.l.b16 %v214
      %v289 = vunpack.c.h.b16 %v214
      %v290 = vunpack.c.l.b16 %v215
      %v291 = vunpack.c.h.b16 %v215
      %v292 = vunpack.c.l.b16 %v216
      %v293 = vunpack.c.h.b16 %v216
      %v294 = vunpack.c.l.b16 %v217
      %v295 = vunpack.c.h.b16 %v217
      %v296 = vunpack.c.l.b16 %v218
      %v297 = vunpack.c.h.b16 %v218
      %v298 = vunpack.c.l.b16 %v219
      %v299 = vunpack.c.h.b16 %v219
      %v300 = vunpack.c.l.b16 %v220
      %v301 = vunpack.c.h.b16 %v220
      %v302 = vunpack.c.l.b16 %v221
      %v303 = vunpack.c.h.b16 %v221
      %v304 = vunpack.c.l.b16 %v222
      %v305 = vunpack.c.h.b16 %v222
      %v306 = vunpack.c.l.b16 %v223
      %v307 = vunpack.c.h.b16 %v223
      %v308 = vunpack.c.l.b16 %v224
      %v309 = vunpack.c.h.b16 %v224
      %v310 = vunpack.c.l.b16 %v225
      %v311 = vunpack.c.h.b16 %v225
      %v312 = vunpack.c.l.b16 %v226
      %v313 = vunpack.c.h.b16 %v226
      %v314 = vunpack.c.l.b16 %v227
      %v315 = vunpack.c.h.b16 %v227
      %v316 = vunpack.c.l.b16 %v228
      %v317 = vunpack.c.h.b16 %v228
      %v318 = vunpack.c.l.b16 %v229
      %v319 = vunpack.c.h.b16 %v229
      %v320 = vunpack.c.l.b16 %v230
      %v321 = vunpack.c.h.b16 %v230
      %v322 = vunpack.c.l.b16 %v231
      %v323 = vunpack.c.h.b16 %v231
      %v324 = vunpack.c.l.b16 %v232
      %v325 = vunpack.c.h.b16 %v232
      %v326 = vunpack.c.l.b16 %v233
      %v327 = vunpack.c.h.b16 %v233
      %v328 = vunpack.c.l.b16 %v234
      %v329 = vunpack.c.h.b16 %v234
      %v330 = vunpack.c.l.b16 %v235
      %v331 = vunpack.c.h.b16 %v235
      %v332 = vpack.c.b16 %v272, %v268
      %v333 = vpack.c.b16 %v273, %v269
      %v334 = vpack.c.b16 %v274, %v270
      %v335 = vpack.c.b16 %v275, %v271
      %v336 = vpack.c.b16 %v280, %v276
      %v337 = vpack.c.b16 %v281, %v277
      %v338 = vpack.c.b16 %v282, %v278
      %v339 = vpack.c.b16 %v283, %v279
      %v340 = vpack.c.b16 %v288, %v284
      %v341 = vpack.c.b16 %v289, %v285
      %v342 = vpack.c.b16 %v290, %v286
      %v343 = vpack.c.b16 %v291, %v287
      %v344 = vpack.c.b16 %v296, %v292
      %v345 = vpack.c.b16 %v297, %v293
      %v346 = vpack.c.b16 %v298, %v294
      %v347 = vpack.c.b16 %v299, %v295
      %v348 = vpack.c.b16 %v304, %v300
      %v349 = vpack.c.b16 %v305, %v301
      %v350 = vpack.c.b16 %v306, %v302
      %v351 = vpack.c.b16 %v307, %v303
      %v352 = vpack.c.b16 %v312, %v308
      %v353 = vpack.c.b16 %v313, %v309
      %v354 = vpack.c.b16 %v314, %v310
      %v355 = vpack.c.b16 %v315, %v311
      %v356 = vpack.c.b16 %v320, %v316
      %v357 = vpack.c.b16 %v321, %v317
      %v358 = vpack.c.b16 %v322, %v318
      %v359 = vpack.c.b16 %v323, %v319
      %v360 = vpack.c.b16 %v328, %v324
      %v361 = vpack.c.b16 %v329, %v325
      %v362 = vpack.c.b16 %v330, %v326
      %v363 = vpack.c.b16 %v331, %v327
      %396 = vmatprep.subr.bf16.mxu0 %v333
      %397 = vmatpush1.bf16.msra.mxu0 %v332
      %398 = vmatprep.subr.bf16.mxu0 %v337
      %399 = vmatpush1.bf16.msra.mxu0 %v336
      %400 = vmatprep.subr.bf16.mxu0 %v341
      %401 = vmatpush1.bf16.msra.mxu0 %v340
      %402 = vmatprep.subr.bf16.mxu0 %v345
      %403 = vmatpush1.bf16.msra.mxu0 %v344
      %404 = vmatprep.subr.bf16.mxu0 %v349
      %405 = vmatpush1.bf16.msra.mxu0 %v348
      %406 = vmatprep.subr.bf16.mxu0 %v353
      %407 = vmatpush1.bf16.msra.mxu0 %v352
      %408 = vmatprep.subr.bf16.mxu0 %v357
      %409 = vmatpush1.bf16.msra.mxu0 %v356
      %410 = vmatprep.subr.bf16.mxu0 %v361
      %411 = vmatpush1.bf16.msra.mxu0 %v360
      %412 = vmatprep.subr.bf16.mxu0 0
      %413 = vmatpush1.bf16.msra.mxu0 0
      %414 = vmatprep.subr.bf16.mxu0 0
      %415 = vmatpush1.bf16.msra.mxu0 0
      %416 = vmatprep.subr.bf16.mxu0 0
      %417 = vmatpush1.bf16.msra.mxu0 0
      %418 = vmatprep.subr.bf16.mxu0 0
      %419 = vmatpush1.bf16.msra.mxu0 0
      %420 = vmatprep.subr.bf16.mxu0 0
      %421 = vmatpush1.bf16.msra.mxu0 0
      %422 = vmatprep.subr.bf16.mxu0 0
      %423 = vmatpush1.bf16.msra.mxu0 0
      %424 = vmatprep.subr.bf16.mxu0 0
      %425 = vmatpush1.bf16.msra.mxu0 0
      %426 = vmatprep.subr.bf16.mxu0 0
      %427 = vmatpush1.bf16.msra.mxu0 0
      %428 = vmatprep.mubr.bf16.mxu0 0
      %429 = vmatmul.mubr.bf16.gmra.mrb[0].mxu0 %v203
      %v430 = vpop.f32.mrb[0].mxu0
      %v431 = vadd.f32 0.0, %v430
      %v432 = vpop.f32.mrb[0].mxu0
      %v433 = vadd.f32 0.0, %v432
      %v434 = vpop.f32.mrb[0].mxu0
      %v435 = vpop.f32.mrb[0].mxu0
      %436 = vdwg.mxu0
      %437 = vmatprep.subr.bf16.mxu0 %v335
      %438 = vmatpush1.bf16.msra.mxu0 %v334
      %439 = vmatprep.subr.bf16.mxu0 %v339
      %440 = vmatpush1.bf16.msra.mxu0 %v338
      %441 = vmatprep.subr.bf16.mxu0 %v343
      %442 = vmatpush1.bf16.msra.mxu0 %v342
      %443 = vmatprep.subr.bf16.mxu0 %v347
      %444 = vmatpush1.bf16.msra.mxu0 %v346
      %445 = vmatprep.subr.bf16.mxu0 %v351
      %446 = vmatpush1.bf16.msra.mxu0 %v350
      %447 = vmatprep.subr.bf16.mxu0 %v355
      %448 = vmatpush1.bf16.msra.mxu0 %v354
      %449 = vmatprep.subr.bf16.mxu0 %v359
      %450 = vmatpush1.bf16.msra.mxu0 %v358
      %451 = vmatprep.subr.bf16.mxu0 %v363
      %452 = vmatpush1.bf16.msra.mxu0 %v362
      %453 = vmatprep.subr.bf16.mxu0 0
      %454 = vmatpush1.bf16.msra.mxu0 0
      %455 = vmatprep.subr.bf16.mxu0 0
      %456 = vmatpush1.bf16.msra.mxu0 0
      %457 = vmatprep.subr.bf16.mxu0 0
      %458 = vmatpush1.bf16.msra.mxu0 0
      %459 = vmatprep.subr.bf16.mxu0 0
      %460 = vmatpush1.bf16.msra.mxu0 0
      %461 = vmatprep.subr.bf16.mxu0 0
      %462 = vmatpush1.bf16.msra.mxu0 0
      %463 = vmatprep.subr.bf16.mxu0 0
      %464 = vmatpush1.bf16.msra.mxu0 0
      %465 = vmatprep.subr.bf16.mxu0 0
      %466 = vmatpush1.bf16.msra.mxu0 0
      %467 = vmatprep.subr.bf16.mxu0 0
      %468 = vmatpush1.bf16.msra.mxu0 0
      %469 = vmatprep.mubr.bf16.mxu0 0
      %470 = vmatmul.mubr.bf16.gmra.mrb[0].mxu0 %v203
      %v471 = vpop.f32.mrb[0].mxu0
      %v472 = vadd.f32 0.0, %v471
      %v473 = vpop.f32.mrb[0].mxu0
      %v474 = vadd.f32 0.0, %v473
      %v475 = vpop.f32.mrb[0].mxu0
      %v476 = vpop.f32.mrb[0].mxu0
      %477 = vdwg.mxu0
      %v478 = vmax.f32 %v431, 0.0
      %v479 = vmax.f32 %v433, 0.0
      %v480 = vmax.f32 %v472, 0.0
      %v481 = vmax.f32 %v474, 0.0
      %v482 = vpack.c.bf16 %v478, %v478
      %v483 = vpack.c.bf16 %v479, %v479
      %v484 = vpack.c.bf16 %v480, %v480
      %v485 = vpack.c.bf16 %v481, %v481
      %v486 = vld [vmem:[%s2] sm:$0xf]
      %v487 = vld [vmem:[%s2 + $0x4] sm:$0xf]
      %v488 = vld [vmem:[%s2 + $0x8] sm:$0xf]
      %v489 = vld [vmem:[%s2 + $0xc] sm:$0xf]
      %v490 = vld [vmem:[%s2 + $0x10] sm:$0xf]
      %v491 = vld [vmem:[%s2 + $0x14] sm:$0xf]
      %v492 = vld [vmem:[%s2 + $0x18] sm:$0xf]
      %v493 = vld [vmem:[%s2 + $0x1c] sm:$0xf]
      %v494 = vld [vmem:[%s2 + $0x20] sm:$0xf]
      %v495 = vld [vmem:[%s2 + $0x24] sm:$0xf]
      %v496 = vld [vmem:[%s2 + $0x28] sm:$0xf]
      %v497 = vld [vmem:[%s2 + $0x2c] sm:$0xf]
      %v498 = vld [vmem:[%s2 + $0x30] sm:$0xf]
      %v499 = vld [vmem:[%s2 + $0x34] sm:$0xf]
      %v500 = vld [vmem:[%s2 + $0x38] sm:$0xf]
      %v501 = vld [vmem:[%s2 + $0x3c] sm:$0xf]
      %v502 = vld [vmem:[%s2 + $0x40] sm:$0xf]
      %v503 = vld [vmem:[%s2 + $0x44] sm:$0xf]
      %v504 = vld [vmem:[%s2 + $0x48] sm:$0xf]
      %v505 = vld [vmem:[%s2 + $0x4c] sm:$0xf]
      %v506 = vld [vmem:[%s2 + $0x50] sm:$0xf]
      %v507 = vld [vmem:[%s2 + $0x54] sm:$0xf]
      %v508 = vld [vmem:[%s2 + $0x58] sm:$0xf]
      %v509 = vld [vmem:[%s2 + $0x5c] sm:$0xf]
      %v510 = vld [vmem:[%s2 + $0x60] sm:$0xf]
      %v511 = vld [vmem:[%s2 + $0x64] sm:$0xf]
      %v512 = vld [vmem:[%s2 + $0x68] sm:$0xf]
      %v513 = vld [vmem:[%s2 + $0x6c] sm:$0xf]
      %v514 = vld [vmem:[%s2 + $0x70] sm:$0xf]
      %v515 = vld [vmem:[%s2 + $0x74] sm:$0xf]
      %v516 = vld [vmem:[%s2 + $0x78] sm:$0xf]
      %v517 = vld [vmem:[%s2 + $0x7c] sm:$0xf]
      %v518 = vld [vmem:[%s2 + $0x80] sm:$0xf]
      %v519 = vld [vmem:[%s2 + $0x84] sm:$0xf]
      %v520 = vld [vmem:[%s2 + $0x88] sm:$0xf]
      %v521 = vld [vmem:[%s2 + $0x8c] sm:$0xf]
      %v522 = vld [vmem:[%s2 + $0x90] sm:$0xf]
      %v523 = vld [vmem:[%s2 + $0x94] sm:$0xf]
      %v524 = vld [vmem:[%s2 + $0x98] sm:$0xf]
      %v525 = vld [vmem:[%s2 + $0x9c] sm:$0xf]
      %v526 = vld [vmem:[%s2 + $0xa0] sm:$0xf]
      %v527 = vld [vmem:[%s2 + $0xa4] sm:$0xf]
      %v528 = vld [vmem:[%s2 + $0xa8] sm:$0xf]
      %v529 = vld [vmem:[%s2 + $0xac] sm:$0xf]
      %v530 = vld [vmem:[%s2 + $0xb0] sm:$0xf]
      %v531 = vld [vmem:[%s2 + $0xb4] sm:$0xf]
      %v532 = vld [vmem:[%s2 + $0xb8] sm:$0xf]
      %v533 = vld [vmem:[%s2 + $0xbc] sm:$0xf]
      %v534 = vld [vmem:[%s2 + $0xc0] sm:$0xf]
      %v535 = vld [vmem:[%s2 + $0xc4] sm:$0xf]
      %v536 = vld [vmem:[%s2 + $0xc8] sm:$0xf]
      %v537 = vld [vmem:[%s2 + $0xcc] sm:$0xf]
      %v538 = vld [vmem:[%s2 + $0xd0] sm:$0xf]
      %v539 = vld [vmem:[%s2 + $0xd4] sm:$0xf]
      %v540 = vld [vmem:[%s2 + $0xd8] sm:$0xf]
      %v541 = vld [vmem:[%s2 + $0xdc] sm:$0xf]
      %v542 = vld [vmem:[%s2 + $0xe0] sm:$0xf]
      %v543 = vld [vmem:[%s2 + $0xe4] sm:$0xf]
      %v544 = vld [vmem:[%s2 + $0xe8] sm:$0xf]
      %v545 = vld [vmem:[%s2 + $0xec] sm:$0xf]
      %v546 = vld [vmem:[%s2 + $0xf0] sm:$0xf]
      %v547 = vld [vmem:[%s2 + $0xf4] sm:$0xf]
      %v548 = vld [vmem:[%s2 + $0xf8] sm:$0xf]
      %v549 = vld [vmem:[%s2 + $0xfc] sm:$0xf]
      %v614 = vunpack.c.l.b16 %v486
      %v615 = vunpack.c.l.b16 %v487
      %v616 = vunpack.c.l.b16 %v488
      %v617 = vunpack.c.l.b16 %v489
      %v618 = vunpack.c.l.b16 %v490
      %v619 = vunpack.c.l.b16 %v491
      %v620 = vunpack.c.l.b16 %v492
      %v621 = vunpack.c.l.b16 %v493
      %v622 = vunpack.c.l.b16 %v494
      %v623 = vunpack.c.l.b16 %v495
      %v624 = vunpack.c.l.b16 %v496
      %v625 = vunpack.c.l.b16 %v497
      %v626 = vunpack.c.l.b16 %v498
      %v627 = vunpack.c.l.b16 %v499
      %v628 = vunpack.c.l.b16 %v500
      %v629 = vunpack.c.l.b16 %v501
      %v630 = vunpack.c.l.b16 %v502
      %v631 = vunpack.c.l.b16 %v503
      %v632 = vunpack.c.l.b16 %v504
      %v633 = vunpack.c.l.b16 %v505
      %v634 = vunpack.c.l.b16 %v506
      %v635 = vunpack.c.l.b16 %v507
      %v636 = vunpack.c.l.b16 %v508
      %v637 = vunpack.c.l.b16 %v509
      %v638 = vunpack.c.l.b16 %v510
      %v639 = vunpack.c.l.b16 %v511
      %v640 = vunpack.c.l.b16 %v512
      %v641 = vunpack.c.l.b16 %v513
      %v642 = vunpack.c.l.b16 %v514
      %v643 = vunpack.c.l.b16 %v515
      %v644 = vunpack.c.l.b16 %v516
      %v645 = vunpack.c.l.b16 %v517
      %v646 = vunpack.c.l.b16 %v518
      %v647 = vunpack.c.l.b16 %v519
      %v648 = vunpack.c.l.b16 %v520
      %v649 = vunpack.c.l.b16 %v521
      %v650 = vunpack.c.l.b16 %v522
      %v651 = vunpack.c.l.b16 %v523
      %v652 = vunpack.c.l.b16 %v524
      %v653 = vunpack.c.l.b16 %v525
      %v654 = vunpack.c.l.b16 %v526
      %v655 = vunpack.c.l.b16 %v527
      %v656 = vunpack.c.l.b16 %v528
      %v657 = vunpack.c.l.b16 %v529
      %v658 = vunpack.c.l.b16 %v530
      %v659 = vunpack.c.l.b16 %v531
      %v660 = vunpack.c.l.b16 %v532
      %v661 = vunpack.c.l.b16 %v533
      %v662 = vunpack.c.l.b16 %v534
      %v663 = vunpack.c.l.b16 %v535
      %v664 = vunpack.c.l.b16 %v536
      %v665 = vunpack.c.l.b16 %v537
      %v666 = vunpack.c.l.b16 %v538
      %v667 = vunpack.c.l.b16 %v539
      %v668 = vunpack.c.l.b16 %v540
      %v669 = vunpack.c.l.b16 %v541
      %v670 = vunpack.c.l.b16 %v542
      %v671 = vunpack.c.l.b16 %v543
      %v672 = vunpack.c.l.b16 %v544
      %v673 = vunpack.c.l.b16 %v545
      %v674 = vunpack.c.l.b16 %v546
      %v675 = vunpack.c.l.b16 %v547
      %v676 = vunpack.c.l.b16 %v548
      %v677 = vunpack.c.l.b16 %v549
      %v678 = vpack.c.b16 %v615, %v614
      %v679 = vpack.c.b16 %v617, %v616
      %v680 = vpack.c.b16 %v619, %v618
      %v681 = vpack.c.b16 %v621, %v620
      %v682 = vpack.c.b16 %v623, %v622
      %v683 = vpack.c.b16 %v625, %v624
      %v684 = vpack.c.b16 %v627, %v626
      %v685 = vpack.c.b16 %v629, %v628
      %v686 = vpack.c.b16 %v631, %v630
      %v687 = vpack.c.b16 %v633, %v632
      %v688 = vpack.c.b16 %v635, %v634
      %v689 = vpack.c.b16 %v637, %v636
      %v690 = vpack.c.b16 %v639, %v638
      %v691 = vpack.c.b16 %v641, %v640
      %v692 = vpack.c.b16 %v643, %v642
      %v693 = vpack.c.b16 %v645, %v644
      %v694 = vpack.c.b16 %v647, %v646
      %v695 = vpack.c.b16 %v649, %v648
      %v696 = vpack.c.b16 %v651, %v650
      %v697 = vpack.c.b16 %v653, %v652
      %v698 = vpack.c.b16 %v655, %v654
      %v699 = vpack.c.b16 %v657, %v656
      %v700 = vpack.c.b16 %v659, %v658
      %v701 = vpack.c.b16 %v661, %v660
      %v702 = vpack.c.b16 %v663, %v662
      %v703 = vpack.c.b16 %v665, %v664
      %v704 = vpack.c.b16 %v667, %v666
      %v705 = vpack.c.b16 %v669, %v668
      %v706 = vpack.c.b16 %v671, %v670
      %v707 = vpack.c.b16 %v673, %v672
      %v708 = vpack.c.b16 %v675, %v674
      %v709 = vpack.c.b16 %v677, %v676
      %742 = vmatprep.subr.bf16.mxu0 0
      %743 = vmatpush1.bf16.msra.mxu0 %v678
      %744 = vmatprep.subr.bf16.mxu0 0
      %745 = vmatpush1.bf16.msra.mxu0 %v679
      %746 = vmatprep.subr.bf16.mxu0 0
      %747 = vmatpush1.bf16.msra.mxu0 %v680
      %748 = vmatprep.subr.bf16.mxu0 0
      %749 = vmatpush1.bf16.msra.mxu0 %v681
      %750 = vmatprep.subr.bf16.mxu0 0
      %751 = vmatpush1.bf16.msra.mxu0 %v682
      %752 = vmatprep.subr.bf16.mxu0 0
      %753 = vmatpush1.bf16.msra.mxu0 %v683
      %754 = vmatprep.subr.bf16.mxu0 0
      %755 = vmatpush1.bf16.msra.mxu0 %v684
      %756 = vmatprep.subr.bf16.mxu0 0
      %757 = vmatpush1.bf16.msra.mxu0 %v685
      %758 = vmatprep.subr.bf16.mxu0 0
      %759 = vmatpush1.bf16.msra.mxu0 %v686
      %760 = vmatprep.subr.bf16.mxu0 0
      %761 = vmatpush1.bf16.msra.mxu0 %v687
      %762 = vmatprep.subr.bf16.mxu0 0
      %763 = vmatpush1.bf16.msra.mxu0 %v688
      %764 = vmatprep.subr.bf16.mxu0 0
      %765 = vmatpush1.bf16.msra.mxu0 %v689
      %766 = vmatprep.subr.bf16.mxu0 0
      %767 = vmatpush1.bf16.msra.mxu0 %v690
      %768 = vmatprep.subr.bf16.mxu0 0
      %769 = vmatpush1.bf16.msra.mxu0 %v691
      %770 = vmatprep.subr.bf16.mxu0 0
      %771 = vmatpush1.bf16.msra.mxu0 %v692
      %772 = vmatprep.subr.bf16.mxu0 0
      %773 = vmatpush1.bf16.msra.mxu0 %v693
      %774 = vmatprep.mubr.bf16.mxu0 %v483
      %775 = vmatmul.mubr.bf16.gmra.mrb[0].mxu0 %v482
      %v776 = vpop.f32.mrb[0].mxu0
      %v777 = vadd.f32 0.0, %v776
      %v778 = vpop.f32.mrb[0].mxu0
      %v779 = vpop.f32.mrb[0].mxu0
      %v780 = vpop.f32.mrb[0].mxu0
      %781 = vdwg.mxu0
      %782 = vmatprep.subr.bf16.mxu0 0
      %783 = vmatpush1.bf16.msra.mxu0 %v694
      %784 = vmatprep.subr.bf16.mxu0 0
      %785 = vmatpush1.bf16.msra.mxu0 %v695
      %786 = vmatprep.subr.bf16.mxu0 0
      %787 = vmatpush1.bf16.msra.mxu0 %v696
      %788 = vmatprep.subr.bf16.mxu0 0
      %789 = vmatpush1.bf16.msra.mxu0 %v697
      %790 = vmatprep.subr.bf16.mxu0 0
      %791 = vmatpush1.bf16.msra.mxu0 %v698
      %792 = vmatprep.subr.bf16.mxu0 0
      %793 = vmatpush1.bf16.msra.mxu0 %v699
      %794 = vmatprep.subr.bf16.mxu0 0
      %795 = vmatpush1.bf16.msra.mxu0 %v700
      %796 = vmatprep.subr.bf16.mxu0 0
      %797 = vmatpush1.bf16.msra.mxu0 %v701
      %798 = vmatprep.subr.bf16.mxu0 0
      %799 = vmatpush1.bf16.msra.mxu0 %v702
      %800 = vmatprep.subr.bf16.mxu0 0
      %801 = vmatpush1.bf16.msra.mxu0 %v703
      %802 = vmatprep.subr.bf16.mxu0 0
      %803 = vmatpush1.bf16.msra.mxu0 %v704
      %804 = vmatprep.subr.bf16.mxu0 0
      %805 = vmatpush1.bf16.msra.mxu0 %v705
      %806 = vmatprep.subr.bf16.mxu0 0
      %807 = vmatpush1.bf16.msra.mxu0 %v706
      %808 = vmatprep.subr.bf16.mxu0 0
      %809 = vmatpush1.bf16.msra.mxu0 %v707
      %810 = vmatprep.subr.bf16.mxu0 0
      %811 = vmatpush1.bf16.msra.mxu0 %v708
      %812 = vmatprep.subr.bf16.mxu0 0
      %813 = vmatpush1.bf16.msra.mxu0 %v709
      %814 = vmatprep.mubr.bf16.mxu0 %v485
      %815 = vmatmul.mubr.bf16.gmra.mrb[0].mxu0 %v484
      %v816 = vpop.f32.mrb[0].mxu0
      %v817 = vadd.f32 %v777, %v816
      %v818 = vpop.f32.mrb[0].mxu0
      %v819 = vpop.f32.mrb[0].mxu0
      %v820 = vpop.f32.mrb[0].mxu0
      %821 = vdwg.mxu0
      %822 = vst [vmem:[%s170] sm:$0xff] %v817
      %p823 = scmp.lt.s32.totalorder %s14, 1
      %s824 = scalar_select %p823, %s14, 1
      %s825 = smul.addr %s824, 8
      %s826 = scalar_lea.vmem %s3, %s825
      // Predicated region
      $region33: #{cifar_hash_convnet_forward.5} parent=31 // pred_check
        %p827 = pneg %p100
      $region34: #{cifar_hash_convnet_forward.5} parent=31 // pred_check_branch
        %829 = sbr.rel (%p827) target = $region36
      $region35: #{cifar_hash_convnet_forward.5} parent=31 // pred_region
        _
      $region36: #{cifar_hash_convnet_forward.5} parent=31 // pred_fallthru
        _
    $region32: #{cifar_hash_convnet_forward.5} parent=5 // pred_fallthru
      _
    %p830 = scmp.le.s32.totalorder 2, %s9
    // Predicated region
    $region37: #{cifar_hash_convnet_forward.5} parent=5 // pred_check
      %p831 = pneg %p830
    $region38: #{cifar_hash_convnet_forward.5} parent=5 // pred_check_branch
      %833 = sbr.rel (%p831) target = $region40
    $region39: #{cifar_hash_convnet_forward.5} parent=5 // pred_region
      %s834 = ssub.s32 %s9, 2
      // Predicated region
      $region41: #{cifar_hash_convnet_forward.5} parent=39 // pred_check
        %p835 = pneg %p106
      $region42: #{cifar_hash_convnet_forward.5} parent=39 // pred_check_branch
        %837 = sbr.rel (%p835) target = $region44
      $region43: #{cifar_hash_convnet_forward.5} parent=39 // pred_region
        %p838 = scmp.lt.s32.totalorder %s15, 1
        %s839 = scalar_select %p838, %s15, 1
        %s840 = smul.addr %s839, 8
        %s841 = scalar_lea.vmem %s3, %s840
      $region44: #{cifar_hash_convnet_forward.5} parent=39 // pred_fallthru
        _
    $region40: #{cifar_hash_convnet_forward.5} parent=5 // pred_fallthru
      _
  $region6: #{cifar_hash_convnet_forward.5} parent=0 // loop_footer
    %s13 = sadd.s32 1, %s9
  $region7: #{cifar_hash_convnet_forward.5} parent=0 // loop_footer_branch
    %8 = sbr.rel target = $region3
  $region8: #{cifar_hash_convnet_forward.5} parent=0 // loop_exit
    _

</llo_original>
